<compile_context>
chip_gen: v6e
topology: v6e:2x2x1
jax: 0.10.0
libtpu: 0.0.40
codegen_flags: <defaults>
</compile_context>

<pallas_src>
import functools

import jax
import jax.numpy as jnp
from jax.experimental import pallas as pl
from jax.experimental.pallas import tpu as pltpu


def edge_gnn_kernel(m1_ref, adj_ref, h_ref,
                    w2_ref, b2_ref, wi_ref, bi_ref, wh_ref, bh_ref,
                    out_ref, acc_ref, *, m1_resident):
    k = pl.program_id(1)
    tk = adj_ref.shape[1]

    # Source-rows slab of m1 for this k step (bf16).
    if m1_resident:
        start = pl.multiple_of(k * tk, tk)
        m1 = m1_ref[pl.ds(start, tk), :]
    else:
        m1 = m1_ref[...]

    # Neighbour aggregation: acc_i (+)= adj[i, k] @ m1[k]
    # int8 (0/1) -> bf16 upcast on the VPU (hidden under DMA), bf16 x bf16 MXU
    # dot with f32 accumulation.
    adj = adj_ref[...].astype(jnp.bfloat16)
    prod = jnp.dot(adj, m1, preferred_element_type=jnp.float32)

    @pl.when(k == 0)
    def _():
        acc_ref[...] = prod

    @pl.when(k > 0)
    def _():
        acc_ref[...] += prod

    # Epilogue on the last reduction step: message_pass_lin + fused GRU.
    @pl.when(k == pl.num_programs(1) - 1)
    def _():
        M = out_ref.shape[-1]
        h = h_ref[...]                                              # [tE, M]
        m = jnp.maximum(
            jnp.dot(acc_ref[...], w2_ref[...],
                    preferred_element_type=jnp.float32) + b2_ref[...],
            0.0)
        # Fused GRU gates: two 3M-wide matmuls (PyTorch gate order r, z, n).
        gi = (jnp.dot(m, wi_ref[...], preferred_element_type=jnp.float32)
              + bi_ref[...])                                        # [tE, 3M]
        gh = (jnp.dot(h, wh_ref[...], preferred_element_type=jnp.float32)
              + bh_ref[...])                                        # [tE, 3M]
        r = jax.nn.sigmoid(gi[:, 0 * M:1 * M] + gh[:, 0 * M:1 * M])
        z = jax.nn.sigmoid(gi[:, 1 * M:2 * M] + gh[:, 1 * M:2 * M])
        n = jnp.tanh(gi[:, 2 * M:3 * M] + r * gh[:, 2 * M:3 * M])
        out_ref[...] = (1.0 - z) * n + z * h


def _round_up(x, m):
    return ((x + m - 1) // m) * m


def _pick_tile(n_pad, desired):
    """Largest multiple of 128 that divides n_pad and is <= desired."""
    t = max(128, min(desired, n_pad))
    t = (t // 128) * 128
    while n_pad % t:
        t -= 128
    return t


@functools.partial(jax.jit, static_argnames=("tile_e", "tile_k"))
def edge_gnn_layer(msg_old, edge_feat, nb_adj, params, *, tile_e=512, tile_k=512):
    E, M = msg_old.shape

    # ---- Stage 1 hoisted to the wrapper (tiny; done once, not per i-tile) ----
    xcat = jnp.concatenate([msg_old, edge_feat], axis=1)            # [E, M+F]
    m1 = jnp.maximum(xcat @ params["w1"] + params["b1"], 0.0)
    m1 = m1.astype(jnp.bfloat16)                                    # [E, M]

    # 0/1 adjacency is exact in int8; halves HBM traffic of the dominant
    # [E, E] stream vs bf16 (quarter vs f32).
    adj = nb_adj.astype(jnp.int8)

    # ---- Ragged E: pad to a multiple of 128 and pick divisor tiles ----------
    E_pad = _round_up(E, 128)
    # Keep >= 2 row tiles where possible so the "parallel" i axis can still be
    # sharded across v7x's two TensorCores.
    te = _pick_tile(E_pad, min(tile_e, E_pad // 2 if E_pad >= 256 else E_pad))
    tk = _pick_tile(E_pad, tile_k)
    if E_pad > E:
        pad = E_pad - E
        m1 = jnp.pad(m1, ((0, pad), (0, 0)))
        adj = jnp.pad(adj, ((0, pad), (0, pad)))
        h_in = jnp.pad(msg_old, ((0, pad), (0, 0)))
    else:
        h_in = msg_old

    grid = (E_pad // te, E_pad // tk)

    # m1 is kept fully VMEM-resident (DMA'd once) unless it is too large.
    m1_bytes = E_pad * M * 2
    m1_resident = m1_bytes <= 8 * 1024 * 1024
    if m1_resident:
        m1_spec = pl.BlockSpec((E_pad, M), lambda i, k: (0, 0))
    else:
        m1_spec = pl.BlockSpec((tk, M), lambda i, k: (k, 0))

    def full_spec(arr):
        # small weight fully resident in VMEM, same block for every grid step
        return pl.BlockSpec(arr.shape, lambda i, k: (0,) * arr.ndim)

    in_specs = [
        m1_spec,                                                 # m1 (bf16)
        # Single large stream; sweep pipeline_mode=pl.Buffered(3) here if
        # xprof still shows exposed DMA at k-tile boundaries.
        pl.BlockSpec((te, tk), lambda i, k: (i, k)),             # adj (int8)
        pl.BlockSpec((te, M), lambda i, k: (i, 0)),              # h = msg_old
        full_spec(params["w2"]), full_spec(params["b2"]),
        full_spec(params["wi"]), full_spec(params["bi"]),
        full_spec(params["wh"]), full_spec(params["bh"]),
    ]
    out_specs = pl.BlockSpec((te, M), lambda i, k: (i, 0))

    # ---- Cost / VMEM budgeting (consistent with the actual DMA pattern) -----
    weight_bytes = 4 * (M * M + 2 * M * 3 * M + 7 * M)
    m1_traffic = m1_bytes if m1_resident else m1_bytes * grid[0]
    flops = (2 * E_pad * E_pad * M            # aggregation
             + 2 * E_pad * M * M              # message_pass_lin
             + 2 * (2 * E_pad * M * 3 * M))   # fused GRU gates
    bytes_accessed = (E_pad * E_pad           # int8 adjacency
                      + m1_traffic            # m1 (bf16)
                      + 4 * E_pad * M         # h
                      + 4 * E_pad * M         # out
                      + weight_bytes)
    cost = pl.CostEstimate(flops=int(flops),
                           transcendentals=int(3 * E_pad * M),
                           bytes_accessed=int(bytes_accessed))

    vmem_needed = (2 * te * tk                                   # adj (x2 buf)
                   + (m1_bytes if m1_resident else 2 * tk * M * 2)
                   + 2 * te * M * 4                              # h   (x2 buf)
                   + 2 * te * M * 4                              # out (x2 buf)
                   + te * M * 4                                  # acc scratch
                   + weight_bytes)
    vmem_limit = max(32 * 1024 * 1024, int(2 * vmem_needed))

    out_pad = pl.pallas_call(
        functools.partial(edge_gnn_kernel, m1_resident=m1_resident),
        out_shape=jax.ShapeDtypeStruct((E_pad, M), jnp.float32),
        grid_spec=pltpu.PrefetchScalarGridSpec(
            num_scalar_prefetch=0,
            grid=grid,
            in_specs=in_specs,
            out_specs=out_specs,
            scratch_shapes=[pltpu.VMEM((te, M), jnp.float32)],
        ),
        compiler_params=pltpu.CompilerParams(
            dimension_semantics=("parallel", "arbitrary"),
            vmem_limit_bytes=vmem_limit,
        ),
        cost_estimate=cost,
    )(m1, adj, h_in, params["w2"], params["b2"],
      params["wi"], params["bi"], params["wh"], params["bh"])

    return out_pad[:E] if E_pad > E else out_pad


def _uniform(key, shape, fan_in):
    k = 1.0 / jnp.sqrt(jnp.float32(fan_in))
    return jax.random.uniform(key, shape, jnp.float32, -k, k)


def init_params(key, node_feat_dim, edge_feat_dim, message_dim):
    """Init matching the PyTorch module's parameter shapes, packed for TPU."""
    M, F = message_dim, edge_feat_dim
    ks = jax.random.split(key, 8)

    # message_edge_lin: Linear(F + M, M); forward cats (message_old, edge_feat),
    # so the first M input columns hit msg_old and the last F hit edge_feat.
    w1 = _uniform(ks[0], (M, F + M), F + M)            # PyTorch [out, in]
    b1 = _uniform(ks[1], (M,), F + M)
    # message_pass_lin: Linear(M, M)
    w2 = _uniform(ks[2], (M, M), M)
    b2 = _uniform(ks[3], (M,), M)
    # message_node_lin exists in __init__ but is unused in forward(): skipped.
    # GRUCell(M, M): weight_ih [3M, M], weight_hh [3M, M], biases [3M]
    w_ih = _uniform(ks[4], (3 * M, M), M)
    w_hh = _uniform(ks[5], (3 * M, M), M)
    b_ih = _uniform(ks[6], (3 * M,), M)
    b_hh = _uniform(ks[7], (3 * M,), M)

    params = {
        "w1": jnp.transpose(w1),                 # [M+F, M]
        "b1": b1.reshape(1, M),
        "w2": jnp.transpose(w2),                 # [M, M]
        "b2": b2.reshape(1, M),
        # Fused GRU weights [M, 3M] (gate order r, z, n) and biases [1, 3M].
        "wi": jnp.transpose(w_ih),
        "wh": jnp.transpose(w_hh),
        "bi": b_ih.reshape(1, 3 * M),
        "bh": b_hh.reshape(1, 3 * M),
    }
    return params


def reference_forward(msg_old, edge_feat, nb_adj, params):
    """Pure-JAX (f32) mirror of the PyTorch forward for correctness checking."""
    M = msg_old.shape[1]
    x = jnp.concatenate([msg_old, edge_feat], axis=1)
    m = jnp.maximum(x @ params["w1"] + params["b1"], 0.0)
    m = nb_adj @ m
    m = jnp.maximum(m @ params["w2"] + params["b2"], 0.0)
    h = msg_old
    gi = m @ params["wi"] + params["bi"]
    gh = h @ params["wh"] + params["bh"]
    r = jax.nn.sigmoid(gi[:, :M] + gh[:, :M])
    z = jax.nn.sigmoid(gi[:, M:2 * M] + gh[:, M:2 * M])
    n = jnp.tanh(gi[:, 2 * M:] + r * gh[:, 2 * M:])
    return (1.0 - z) * n + z * h


if __name__ == "__main__":
    node_feat_dim = 12   # unused by forward()
    edge_feat_dim = 8
    message_dim = 32
    num_edges = 256      # -> padded/tiled as (tile_e=128) x (tile_k=256)

    key = jax.random.PRNGKey(0)
    k_par, k_msg, k_ef, k_adj = jax.random.split(key, 4)

    params = init_params(k_par, node_feat_dim, edge_feat_dim, message_dim)

    message_old = jax.random.normal(k_msg, (num_edges, message_dim), jnp.float32)
    edge_feat = jax.random.normal(k_ef, (num_edges, edge_feat_dim), jnp.float32)
    # nb_adj: dense 0/1 edge-neighbourhood adjacency (stands in for the sparse
    # matrix in torch.sparse.mm; numerics are identical).
    nb_adj = (jax.random.uniform(k_adj, (num_edges, num_edges)) < 0.3
              ).astype(jnp.float32)

    out = edge_gnn_layer(message_old, edge_feat, nb_adj, params)
    out = jax.block_until_ready(out)

    ref = reference_forward(message_old, edge_feat, nb_adj, params)
    assert out.shape == (num_edges, message_dim)
    # m1 travels through the aggregation in bf16 (accumulation is f32), so the
    # match vs the pure-f32 reference is ~1e-3 relative, not bit-exact.
    assert jnp.allclose(out, ref, atol=2e-2, rtol=2e-2), "mismatch vs reference"

    print("KERNEL_OK")
</pallas_src>

<mosaic_0001>
module attributes {stable_mosaic.version = 11 : i64} {
  func.func @edge_gnn_kernel(%arg0: i32, %arg1: i32, %arg2: memref<256x32xbf16, #tpu.memory_space<vmem>>, %arg3: memref<128x256xi8, #tpu.memory_space<vmem>>, %arg4: memref<128x32xf32, #tpu.memory_space<vmem>>, %arg5: memref<32x32xf32, #tpu.memory_space<vmem>>, %arg6: memref<1x32xf32, #tpu.memory_space<vmem>>, %arg7: memref<32x96xf32, #tpu.memory_space<vmem>>, %arg8: memref<1x96xf32, #tpu.memory_space<vmem>>, %arg9: memref<32x96xf32, #tpu.memory_space<vmem>>, %arg10: memref<1x96xf32, #tpu.memory_space<vmem>>, %arg11: memref<128x32xf32, #tpu.memory_space<vmem>>, %arg12: memref<128x32xf32, #tpu.memory_space<vmem>>) attributes {dimension_semantics = [#tpu.dimension_semantics<parallel>, #tpu.dimension_semantics<arbitrary>], iteration_bounds = array<i64: 2, 1>, scalar_prefetch = 0 : i64, scratch_operands = 1 : i64, tpu.core_type = #tpu.core_type<tc>, window_params = [{pipeline_mode = #tpu.pipeline_mode<synchronous>, transform_indices = @transform_0, window_bounds = array<i64: 256, 32>}, {transform_indices = @transform_1, window_bounds = array<i64: 128, 256>}, {transform_indices = @transform_2, window_bounds = array<i64: 128, 32>}, {pipeline_mode = #tpu.pipeline_mode<synchronous>, transform_indices = @transform_3, window_bounds = array<i64: 32, 32>}, {pipeline_mode = #tpu.pipeline_mode<synchronous>, transform_indices = @transform_4, window_bounds = array<i64: 1, 32>}, {pipeline_mode = #tpu.pipeline_mode<synchronous>, transform_indices = @transform_5, window_bounds = array<i64: 32, 96>}, {pipeline_mode = #tpu.pipeline_mode<synchronous>, transform_indices = @transform_6, window_bounds = array<i64: 1, 96>}, {pipeline_mode = #tpu.pipeline_mode<synchronous>, transform_indices = @transform_7, window_bounds = array<i64: 32, 96>}, {pipeline_mode = #tpu.pipeline_mode<synchronous>, transform_indices = @transform_8, window_bounds = array<i64: 1, 96>}, {transform_indices = @transform_9, window_bounds = array<i64: 128, 32>}]} {
    %c256_i32 = arith.constant 256 : i32
    %0 = arith.muli %arg1, %c256_i32 : i32
    %1 = tpu.assume_multiple %0, 256 : i32
    %2 = arith.index_cast %1 : i32 to index
    %c0 = arith.constant 0 : index
    %3 = vector.load %arg2[%2, %c0] : memref<256x32xbf16, #tpu.memory_space<vmem>>, vector<256x32xbf16>
    %c0_0 = arith.constant 0 : index
    %c0_1 = arith.constant 0 : index
    %4 = vector.load %arg3[%c0_0, %c0_1] : memref<128x256xi8, #tpu.memory_space<vmem>>, vector<128x256xi8>
    %5 = arith.sitofp %4 : vector<128x256xi8> to vector<128x256xbf16>
    %cst = arith.constant dense<0.000000e+00> : vector<128x32xf32>
    %6 = tpu.matmul %5, %3, %cst {dimension_numbers = #tpu.dot_dimension_numbers<[1], [0], [0], [1], [0, 0, 1, 1], [], []>} : vector<128x256xbf16>, vector<256x32xbf16>, vector<128x32xf32> -> vector<128x32xf32>
    %c0_i32 = arith.constant 0 : i32
    %7 = arith.cmpi eq, %arg1, %c0_i32 : i32
    %8 = arith.extui %7 : i1 to i32
    %c0_i32_2 = arith.constant 0 : i32
    %9 = arith.cmpi ne, %8, %c0_i32_2 : i32
    scf.if %9 {
      %c0_7 = arith.constant 0 : index
      %c0_8 = arith.constant 0 : index
      %16 = vector.load %arg12[%c0_7, %c0_8] : memref<128x32xf32, #tpu.memory_space<vmem>>, vector<128x32xf32>
      tpu.vector_store %arg12[%c0_7, %c0_8], %6 {strides = array<i32>} : memref<128x32xf32, #tpu.memory_space<vmem>>, vector<128x32xf32>,
    } else {
    }
    %c0_i32_3 = arith.constant 0 : i32
    %10 = arith.cmpi sgt, %arg1, %c0_i32_3 : i32
    %11 = arith.extui %10 : i1 to i32
    %c0_i32_4 = arith.constant 0 : i32
    %12 = arith.cmpi ne, %11, %c0_i32_4 : i32
    scf.if %12 {
      %c0_7 = arith.constant 0 : index
      %c0_8 = arith.constant 0 : index
      %16 = vector.load %arg12[%c0_7, %c0_8] : memref<128x32xf32, #tpu.memory_space<vmem>>, vector<128x32xf32>
      %17 = arith.addf %16, %6 : vector<128x32xf32>
      %c0_9 = arith.constant 0 : index
      %c0_10 = arith.constant 0 : index
      %18 = vector.load %arg12[%c0_9, %c0_10] : memref<128x32xf32, #tpu.memory_space<vmem>>, vector<128x32xf32>
      tpu.vector_store %arg12[%c0_9, %c0_10], %17 {strides = array<i32>} : memref<128x32xf32, #tpu.memory_space<vmem>>, vector<128x32xf32>,
    } else {
    }
    %c0_i32_5 = arith.constant 0 : i32
    %13 = arith.cmpi eq, %arg1, %c0_i32_5 : i32
    %14 = arith.extui %13 : i1 to i32
    %c0_i32_6 = arith.constant 0 : i32
    %15 = arith.cmpi ne, %14, %c0_i32_6 : i32
    scf.if %15 {
      %c0_7 = arith.constant 0 : index
      %c0_8 = arith.constant 0 : index
      %16 = vector.load %arg4[%c0_7, %c0_8] : memref<128x32xf32, #tpu.memory_space<vmem>>, vector<128x32xf32>
      %c0_9 = arith.constant 0 : index
      %c0_10 = arith.constant 0 : index
      %17 = vector.load %arg12[%c0_9, %c0_10] : memref<128x32xf32, #tpu.memory_space<vmem>>, vector<128x32xf32>
      %c0_11 = arith.constant 0 : index
      %c0_12 = arith.constant 0 : index
      %18 = vector.load %arg5[%c0_11, %c0_12] : memref<32x32xf32, #tpu.memory_space<vmem>>, vector<32x32xf32>
      %cst_13 = arith.constant dense<0.000000e+00> : vector<128x32xf32>
      %19 = tpu.matmul %17, %18, %cst_13 {dimension_numbers = #tpu.dot_dimension_numbers<[1], [0], [0], [1], [0, 0, 1, 1], [], []>} : vector<128x32xf32>, vector<32x32xf32>, vector<128x32xf32> -> vector<128x32xf32>
      %c0_14 = arith.constant 0 : index
      %c0_15 = arith.constant 0 : index
      %20 = vector.load %arg6[%c0_14, %c0_15] : memref<1x32xf32, #tpu.memory_space<vmem>>, vector<1x32xf32>
      %21 = vector.broadcast %20 : vector<1x32xf32> to vector<128x32xf32>
      %22 = arith.addf %19, %21 : vector<128x32xf32>
      %cst_16 = arith.constant 0.000000e+00 : f32
      %23 = vector.broadcast %cst_16 : f32 to vector<128x32xf32>
      %24 = arith.maximumf %22, %23 : vector<128x32xf32>
      %c0_17 = arith.constant 0 : index
      %c0_18 = arith.constant 0 : index
      %25 = vector.load %arg7[%c0_17, %c0_18] : memref<32x96xf32, #tpu.memory_space<vmem>>, vector<32x96xf32>
      %cst_19 = arith.constant dense<0.000000e+00> : vector<128x96xf32>
      %26 = tpu.matmul %24, %25, %cst_19 {dimension_numbers = #tpu.dot_dimension_numbers<[1], [0], [0], [1], [0, 0, 1, 1], [], []>} : vector<128x32xf32>, vector<32x96xf32>, vector<128x96xf32> -> vector<128x96xf32>
      %c0_20 = arith.constant 0 : index
      %c0_21 = arith.constant 0 : index
      %27 = vector.load %arg8[%c0_20, %c0_21] : memref<1x96xf32, #tpu.memory_space<vmem>>, vector<1x96xf32>
      %28 = vector.broadcast %27 : vector<1x96xf32> to vector<128x96xf32>
      %29 = arith.addf %26, %28 : vector<128x96xf32>
      %c0_22 = arith.constant 0 : index
      %c0_23 = arith.constant 0 : index
      %30 = vector.load %arg9[%c0_22, %c0_23] : memref<32x96xf32, #tpu.memory_space<vmem>>, vector<32x96xf32>
      %cst_24 = arith.constant dense<0.000000e+00> : vector<128x96xf32>
      %31 = tpu.matmul %16, %30, %cst_24 {dimension_numbers = #tpu.dot_dimension_numbers<[1], [0], [0], [1], [0, 0, 1, 1], [], []>} : vector<128x32xf32>, vector<32x96xf32>, vector<128x96xf32> -> vector<128x96xf32>
      %c0_25 = arith.constant 0 : index
      %c0_26 = arith.constant 0 : index
      %32 = vector.load %arg10[%c0_25, %c0_26] : memref<1x96xf32, #tpu.memory_space<vmem>>, vector<1x96xf32>
      %33 = vector.broadcast %32 : vector<1x96xf32> to vector<128x96xf32>
      %34 = arith.addf %31, %33 : vector<128x96xf32>
      %35 = vector.extract_strided_slice %29 {offsets = [0, 0], sizes = [128, 32], strides = [1, 1]} : vector<128x96xf32> to vector<128x32xf32>
      %36 = vector.extract_strided_slice %34 {offsets = [0, 0], sizes = [128, 32], strides = [1, 1]} : vector<128x96xf32> to vector<128x32xf32>
      %37 = arith.addf %35, %36 : vector<128x32xf32>
      %38 = arith.negf %37 : vector<128x32xf32>
      %39 = math.exp %38 : vector<128x32xf32>
      %cst_27 = arith.constant 1.000000e+00 : f32
      %40 = vector.broadcast %cst_27 : f32 to vector<128x32xf32>
      %41 = arith.addf %40, %39 : vector<128x32xf32>
      %42 = arith.divf %40, %41 : vector<128x32xf32>
      %43 = vector.extract_strided_slice %29 {offsets = [0, 32], sizes = [128, 32], strides = [1, 1]} : vector<128x96xf32> to vector<128x32xf32>
      %44 = vector.extract_strided_slice %34 {offsets = [0, 32], sizes = [128, 32], strides = [1, 1]} : vector<128x96xf32> to vector<128x32xf32>
      %45 = arith.addf %43, %44 : vector<128x32xf32>
      %46 = arith.negf %45 : vector<128x32xf32>
      %47 = math.exp %46 : vector<128x32xf32>
      %cst_28 = arith.constant 1.000000e+00 : f32
      %48 = vector.broadcast %cst_28 : f32 to vector<128x32xf32>
      %49 = arith.addf %48, %47 : vector<128x32xf32>
      %50 = arith.divf %48, %49 : vector<128x32xf32>
      %51 = vector.extract_strided_slice %29 {offsets = [0, 64], sizes = [128, 32], strides = [1, 1]} : vector<128x96xf32> to vector<128x32xf32>
      %52 = vector.extract_strided_slice %34 {offsets = [0, 64], sizes = [128, 32], strides = [1, 1]} : vector<128x96xf32> to vector<128x32xf32>
      %53 = arith.mulf %42, %52 : vector<128x32xf32>
      %54 = arith.addf %51, %53 : vector<128x32xf32>
      %55 = math.tanh %54 : vector<128x32xf32>
      %cst_29 = arith.constant 1.000000e+00 : f32
      %56 = vector.broadcast %cst_29 : f32 to vector<128x32xf32>
      %57 = arith.subf %56, %50 : vector<128x32xf32>
      %58 = arith.mulf %57, %55 : vector<128x32xf32>
      %59 = arith.mulf %50, %16 : vector<128x32xf32>
      %60 = arith.addf %58, %59 : vector<128x32xf32>
      %c0_30 = arith.constant 0 : index
      %c0_31 = arith.constant 0 : index
      %61 = vector.load %arg11[%c0_30, %c0_31] : memref<128x32xf32, #tpu.memory_space<vmem>>, vector<128x32xf32>
      tpu.vector_store %arg11[%c0_30, %c0_31], %60 {strides = array<i32>} : memref<128x32xf32, #tpu.memory_space<vmem>>, vector<128x32xf32>,
    } else {
    }
    return
  }
  func.func @transform_0(%arg0: i32, %arg1: i32) -> (i32, i32) {
    %c0_i32 = arith.constant 0 : i32
    %c0_i32_0 = arith.constant 0 : i32
    %c0_i32_1 = arith.constant 0 : i32
    return %c0_i32, %c0_i32_0 : i32, i32
  }
  func.func @transform_1(%arg0: i32, %arg1: i32) -> (i32, i32) {
    %c0_i32 = arith.constant 0 : i32
    return %arg0, %arg1 : i32, i32
  }
  func.func @transform_2(%arg0: i32, %arg1: i32) -> (i32, i32) {
    %c0_i32 = arith.constant 0 : i32
    %c0_i32_0 = arith.constant 0 : i32
    return %arg0, %c0_i32 : i32, i32
  }
  func.func @transform_3(%arg0: i32, %arg1: i32) -> (i32, i32) {
    %c0_i32 = arith.constant 0 : i32
    %c0_i32_0 = arith.constant 0 : i32
    %c0_i32_1 = arith.constant 0 : i32
    return %c0_i32, %c0_i32_0 : i32, i32
  }
  func.func @transform_4(%arg0: i32, %arg1: i32) -> (i32, i32) {
    %c0_i32 = arith.constant 0 : i32
    %c0_i32_0 = arith.constant 0 : i32
    %c0_i32_1 = arith.constant 0 : i32
    return %c0_i32, %c0_i32_0 : i32, i32
  }
  func.func @transform_5(%arg0: i32, %arg1: i32) -> (i32, i32) {
    %c0_i32 = arith.constant 0 : i32
    %c0_i32_0 = arith.constant 0 : i32
    %c0_i32_1 = arith.constant 0 : i32
    return %c0_i32, %c0_i32_0 : i32, i32
  }
  func.func @transform_6(%arg0: i32, %arg1: i32) -> (i32, i32) {
    %c0_i32 = arith.constant 0 : i32
    %c0_i32_0 = arith.constant 0 : i32
    %c0_i32_1 = arith.constant 0 : i32
    return %c0_i32, %c0_i32_0 : i32, i32
  }
  func.func @transform_7(%arg0: i32, %arg1: i32) -> (i32, i32) {
    %c0_i32 = arith.constant 0 : i32
    %c0_i32_0 = arith.constant 0 : i32
    %c0_i32_1 = arith.constant 0 : i32
    return %c0_i32, %c0_i32_0 : i32, i32
  }
  func.func @transform_8(%arg0: i32, %arg1: i32) -> (i32, i32) {
    %c0_i32 = arith.constant 0 : i32
    %c0_i32_0 = arith.constant 0 : i32
    %c0_i32_1 = arith.constant 0 : i32
    return %c0_i32, %c0_i32_0 : i32, i32
  }
  func.func @transform_9(%arg0: i32, %arg1: i32) -> (i32, i32) {
    %c0_i32 = arith.constant 0 : i32
    %c0_i32_0 = arith.constant 0 : i32
    return %arg0, %c0_i32 : i32, i32
  }
}

</mosaic_0001>

<llo_original>
// kernel: edge_gnn_layer.1
$region0: #{edge_gnn_layer.1}
  #allocation0 [shape = 'u32[]', space=smem, size = 0x4, offset = 0x4, fixed_abs, tag = 'smem constant byte address 0x4 - core index']
  #allocation1 [shape = 'u32[144,128]{1,0:T(1,128)}', space=vmem, size = 0x12000, scoped, tag = 'internal scratch']
  #allocation2 [shape = 'f32[128,32]{1,0:T(8,128)}', space=vmem, size = 0x10000, scoped, tag = 'scratch operand']
  %s0 = inlined_call_operand.vmem [shape: bf16[256,32], index: 0, kind: input, shape index: {}]
  %s1 = inlined_call_operand.vmem [shape: s8[256,256], index: 1, kind: input, shape index: {}]
  %s2 = inlined_call_operand.vmem [shape: f32[256,32], index: 2, kind: input, shape index: {}]
  %s3 = inlined_call_operand.vmem [shape: f32[32,32], index: 3, kind: input, shape index: {}]
  %s4 = inlined_call_operand.vmem [shape: f32[1,32], index: 4, kind: input, shape index: {}]
  %s5 = inlined_call_operand.vmem [shape: f32[32,96], index: 5, kind: input, shape index: {}]
  %s6 = inlined_call_operand.vmem [shape: f32[1,96], index: 6, kind: input, shape index: {}]
  %s7 = inlined_call_operand.vmem [shape: f32[32,96], index: 7, kind: input, shape index: {}]
  %s8 = inlined_call_operand.vmem [shape: f32[1,96], index: 8, kind: input, shape index: {}]
  %s9 = inlined_call_operand.vmem [shape: f32[256,32], index: 9, kind: output, shape index: {}]
  %s10 = sld [smem:[#allocation0]]
  $region81: #{edge_gnn_layer.1} parent=0
    _
  %s12 = ssub.s32 1, %s10
  %s13 = scalar_select 0, %s12, %s10
  loop: start=0, step=1, limit=4
  $region2: #{edge_gnn_layer.1} parent=0 // loop_pre_header
    _
  $region3: #{edge_gnn_layer.1} parent=0 // loop_header
    %s15 = sphi 0, %s19
    %p16 = scmp.ge.s32.totalorder %s15, 4
    %s22 = sphi 0, %s34
    %s23 = sphi 0, %s30
    %s24 = sphi 0, %s22
    %s25 = sphi 0, %s23
    %s26 = sphi 0, %s24
    %s27 = sphi 0, %s25
    %s35 = sphi 0, %s35
    %s37 = sphi 0, %s35
    %s38 = sphi 0, %s37
    %s52 = sphi 0, %s38
    %s60 = sphi 0, %s62
    %s63 = sphi 0, %s60
    %s64 = sphi 0, %s63
    %s80 = sphi 0, %s64
    %s86 = sphi 0, %s88
    %s89 = sphi 0, %s86
    %s90 = sphi 0, %s89
    %s106 = sphi 0, %s90
    %s110 = sphi 0, %s110
    %s112 = sphi 0, %s110
    %s113 = sphi 0, %s112
    %s127 = sphi 0, %s113
    %s131 = sphi 0, %s131
    %s133 = sphi 0, %s131
    %s134 = sphi 0, %s133
    %s148 = sphi 0, %s134
    %s152 = sphi 0, %s152
    %s154 = sphi 0, %s152
    %s155 = sphi 0, %s154
    %s169 = sphi 0, %s155
    %s173 = sphi 0, %s173
    %s175 = sphi 0, %s173
    %s176 = sphi 0, %s175
    %s190 = sphi 0, %s176
    %s194 = sphi 0, %s194
    %s196 = sphi 0, %s194
    %s197 = sphi 0, %s196
    %s211 = sphi 0, %s197
    %s215 = sphi 0, %s215
    %s217 = sphi 0, %s215
    %s218 = sphi 0, %s217
    %s232 = sphi 0, %s218
    %s238 = sphi 0, %s240
    %s241 = sphi 0, %s238
    %s242 = sphi 0, %s241
    %s258 = sphi 0, %s242
  $region4: #{edge_gnn_layer.1} parent=0 // loop_header_branch
    %18 = sbr.rel (%p16) target = $region8
  $region5: #{edge_gnn_layer.1} parent=0 // loop_body
    %s20 = ssub.s32 %s15, 1
    %s21 = ssub.s32 %s15, 2
    %s28 = sadd.s32 1, %s23
    %p29 = scmp.ge.s32.totalorder %s28, 1
    %s30 = scalar_select %p29, 0, %s28
    %s31 = sadd.s32 1, %s22
    %s32 = scalar_select %p29, %s31, %s22
    %p33 = scmp.ge.s32.totalorder %s32, 2
    %s34 = scalar_select %p33, 0, %s32
    %s36 = sadd.s32 %s35, 1
    %p39 = scmp.eq.s32.totalorder %s15, 1
    %p40 = scmp.ne.s32.totalorder %s35, %s37
    %p41 = scmp.eq.s32.totalorder %s15, 0
    %p42 = por %p40, %p41
    %p43 = scmp.ne.s32.totalorder %s35, %s37
    %p44 = scmp.eq.s32.totalorder %s20, 1
    %p45 = por %p43, %p44
    %p46 = scmp.ne.s32.totalorder %s37, %s38
    %p47 = scmp.eq.s32.totalorder %s20, 0
    %p48 = por %p46, %p47
    %p49 = scmp.ne.s32.totalorder %s37, %s38
    %p50 = scmp.eq.s32.totalorder %s21, 1
    %p51 = por %p49, %p50
    %p53 = scmp.ne.s32.totalorder %s38, %s52
    %p54 = scmp.eq.s32.totalorder %s21, 0
    %p55 = por %p53, %p54
    %s56 = ssub.s32 %s22, %s34
    %s57 = ssub.s32 %s23, %s30
    %s58 = sor.u32 %s56, %s57
    %p59 = scmp.eq.s32.totalorder %s58, 0
    %s61 = sadd.s32 %s60, 1
    %s62 = scalar_select %p59, %s60, %s61
    %p65 = pneg %p59
    %p66 = scmp.eq.s32.totalorder %s15, 1
    %p67 = por %p65, %p66
    %p68 = scmp.ne.s32.totalorder %s60, %s63
    %p69 = scmp.eq.s32.totalorder %s15, 0
    %p70 = por %p68, %p69
    %p71 = scmp.ne.s32.totalorder %s60, %s63
    %p72 = scmp.eq.s32.totalorder %s20, 1
    %p73 = por %p71, %p72
    %p74 = scmp.ne.s32.totalorder %s63, %s64
    %p75 = scmp.eq.s32.totalorder %s20, 0
    %p76 = por %p74, %p75
    %p77 = scmp.ne.s32.totalorder %s63, %s64
    %p78 = scmp.eq.s32.totalorder %s21, 1
    %p79 = por %p77, %p78
    %p81 = scmp.ne.s32.totalorder %s64, %s80
    %p82 = scmp.eq.s32.totalorder %s21, 0
    %p83 = por %p81, %p82
    %s84 = ssub.s32 %s22, %s34
    %p85 = scmp.eq.s32.totalorder %s84, 0
    %s87 = sadd.s32 %s86, 1
    %s88 = scalar_select %p85, %s86, %s87
    %p91 = pneg %p85
    %p92 = scmp.eq.s32.totalorder %s15, 1
    %p93 = por %p91, %p92
    %p94 = scmp.ne.s32.totalorder %s86, %s89
    %p95 = scmp.eq.s32.totalorder %s15, 0
    %p96 = por %p94, %p95
    %p97 = scmp.ne.s32.totalorder %s86, %s89
    %p98 = scmp.eq.s32.totalorder %s20, 1
    %p99 = por %p97, %p98
    %p100 = scmp.ne.s32.totalorder %s89, %s90
    %p101 = scmp.eq.s32.totalorder %s20, 0
    %p102 = por %p100, %p101
    %p103 = scmp.ne.s32.totalorder %s89, %s90
    %p104 = scmp.eq.s32.totalorder %s21, 1
    %p105 = por %p103, %p104
    %p107 = scmp.ne.s32.totalorder %s90, %s106
    %p108 = scmp.eq.s32.totalorder %s21, 0
    %p109 = por %p107, %p108
    %s111 = sadd.s32 %s110, 1
    %p114 = scmp.eq.s32.totalorder %s15, 1
    %p115 = scmp.ne.s32.totalorder %s110, %s112
    %p116 = scmp.eq.s32.totalorder %s15, 0
    %p117 = por %p115, %p116
    %p118 = scmp.ne.s32.totalorder %s110, %s112
    %p119 = scmp.eq.s32.totalorder %s20, 1
    %p120 = por %p118, %p119
    %p121 = scmp.ne.s32.totalorder %s112, %s113
    %p122 = scmp.eq.s32.totalorder %s20, 0
    %p123 = por %p121, %p122
    %p124 = scmp.ne.s32.totalorder %s112, %s113
    %p125 = scmp.eq.s32.totalorder %s21, 1
    %p126 = por %p124, %p125
    %p128 = scmp.ne.s32.totalorder %s113, %s127
    %p129 = scmp.eq.s32.totalorder %s21, 0
    %p130 = por %p128, %p129
    %s132 = sadd.s32 %s131, 1
    %p135 = scmp.eq.s32.totalorder %s15, 1
    %p136 = scmp.ne.s32.totalorder %s131, %s133
    %p137 = scmp.eq.s32.totalorder %s15, 0
    %p138 = por %p136, %p137
    %p139 = scmp.ne.s32.totalorder %s131, %s133
    %p140 = scmp.eq.s32.totalorder %s20, 1
    %p141 = por %p139, %p140
    %p142 = scmp.ne.s32.totalorder %s133, %s134
    %p143 = scmp.eq.s32.totalorder %s20, 0
    %p144 = por %p142, %p143
    %p145 = scmp.ne.s32.totalorder %s133, %s134
    %p146 = scmp.eq.s32.totalorder %s21, 1
    %p147 = por %p145, %p146
    %p149 = scmp.ne.s32.totalorder %s134, %s148
    %p150 = scmp.eq.s32.totalorder %s21, 0
    %p151 = por %p149, %p150
    %s153 = sadd.s32 %s152, 1
    %p156 = scmp.eq.s32.totalorder %s15, 1
    %p157 = scmp.ne.s32.totalorder %s152, %s154
    %p158 = scmp.eq.s32.totalorder %s15, 0
    %p159 = por %p157, %p158
    %p160 = scmp.ne.s32.totalorder %s152, %s154
    %p161 = scmp.eq.s32.totalorder %s20, 1
    %p162 = por %p160, %p161
    %p163 = scmp.ne.s32.totalorder %s154, %s155
    %p164 = scmp.eq.s32.totalorder %s20, 0
    %p165 = por %p163, %p164
    %p166 = scmp.ne.s32.totalorder %s154, %s155
    %p167 = scmp.eq.s32.totalorder %s21, 1
    %p168 = por %p166, %p167
    %p170 = scmp.ne.s32.totalorder %s155, %s169
    %p171 = scmp.eq.s32.totalorder %s21, 0
    %p172 = por %p170, %p171
    %s174 = sadd.s32 %s173, 1
    %p177 = scmp.eq.s32.totalorder %s15, 1
    %p178 = scmp.ne.s32.totalorder %s173, %s175
    %p179 = scmp.eq.s32.totalorder %s15, 0
    %p180 = por %p178, %p179
    %p181 = scmp.ne.s32.totalorder %s173, %s175
    %p182 = scmp.eq.s32.totalorder %s20, 1
    %p183 = por %p181, %p182
    %p184 = scmp.ne.s32.totalorder %s175, %s176
    %p185 = scmp.eq.s32.totalorder %s20, 0
    %p186 = por %p184, %p185
    %p187 = scmp.ne.s32.totalorder %s175, %s176
    %p188 = scmp.eq.s32.totalorder %s21, 1
    %p189 = por %p187, %p188
    %p191 = scmp.ne.s32.totalorder %s176, %s190
    %p192 = scmp.eq.s32.totalorder %s21, 0
    %p193 = por %p191, %p192
    %s195 = sadd.s32 %s194, 1
    %p198 = scmp.eq.s32.totalorder %s15, 1
    %p199 = scmp.ne.s32.totalorder %s194, %s196
    %p200 = scmp.eq.s32.totalorder %s15, 0
    %p201 = por %p199, %p200
    %p202 = scmp.ne.s32.totalorder %s194, %s196
    %p203 = scmp.eq.s32.totalorder %s20, 1
    %p204 = por %p202, %p203
    %p205 = scmp.ne.s32.totalorder %s196, %s197
    %p206 = scmp.eq.s32.totalorder %s20, 0
    %p207 = por %p205, %p206
    %p208 = scmp.ne.s32.totalorder %s196, %s197
    %p209 = scmp.eq.s32.totalorder %s21, 1
    %p210 = por %p208, %p209
    %p212 = scmp.ne.s32.totalorder %s197, %s211
    %p213 = scmp.eq.s32.totalorder %s21, 0
    %p214 = por %p212, %p213
    %s216 = sadd.s32 %s215, 1
    %p219 = scmp.eq.s32.totalorder %s15, 1
    %p220 = scmp.ne.s32.totalorder %s215, %s217
    %p221 = scmp.eq.s32.totalorder %s15, 0
    %p222 = por %p220, %p221
    %p223 = scmp.ne.s32.totalorder %s215, %s217
    %p224 = scmp.eq.s32.totalorder %s20, 1
    %p225 = por %p223, %p224
    %p226 = scmp.ne.s32.totalorder %s217, %s218
    %p227 = scmp.eq.s32.totalorder %s20, 0
    %p228 = por %p226, %p227
    %p229 = scmp.ne.s32.totalorder %s217, %s218
    %p230 = scmp.eq.s32.totalorder %s21, 1
    %p231 = por %p229, %p230
    %p233 = scmp.ne.s32.totalorder %s218, %s232
    %p234 = scmp.eq.s32.totalorder %s21, 0
    %p235 = por %p233, %p234
    %s236 = ssub.s32 %s22, %s34
    %p237 = scmp.eq.s32.totalorder %s236, 0
    %s239 = sadd.s32 %s238, 1
    %s240 = scalar_select %p237, %s238, %s239
    %p243 = pneg %p237
    %p244 = scmp.eq.s32.totalorder %s15, 1
    %p245 = por %p243, %p244
    %p246 = scmp.ne.s32.totalorder %s238, %s241
    %p247 = scmp.eq.s32.totalorder %s15, 0
    %p248 = por %p246, %p247
    %p249 = scmp.ne.s32.totalorder %s238, %s241
    %p250 = scmp.eq.s32.totalorder %s20, 1
    %p251 = por %p249, %p250
    %p252 = scmp.ne.s32.totalorder %s241, %s242
    %p253 = scmp.eq.s32.totalorder %s20, 0
    %p254 = por %p252, %p253
    %p255 = scmp.ne.s32.totalorder %s241, %s242
    %p256 = scmp.eq.s32.totalorder %s21, 1
    %p257 = por %p255, %p256
    %p259 = scmp.ne.s32.totalorder %s242, %s258
    %p260 = scmp.eq.s32.totalorder %s21, 0
    %p261 = por %p259, %p260
    %p262 = scmp.le.s32.totalorder 1, %s15
    %p263 = scmp.lt.s32.totalorder %s15, 3
    %p264 = pnand %p262, %p263
    %p265 = pneg %p264
    // Predicated region
    $region9: #{edge_gnn_layer.1} parent=5 // pred_check
      _
    $region10: #{edge_gnn_layer.1} parent=5 // pred_check_branch
      %267 = sbr.rel (%p264) target = $region12
    $region11: #{edge_gnn_layer.1} parent=5 // pred_region
      %s268 = ssub.s32 %s15, 1
      // Predicated region
      $region13: #{edge_gnn_layer.1} parent=11 // pred_check
        %p269 = pneg %p48
      $region14: #{edge_gnn_layer.1} parent=11 // pred_check_branch
        %271 = sbr.rel (%p269) target = $region16
      $region15: #{edge_gnn_layer.1} parent=11 // pred_region
        _
      $region16: #{edge_gnn_layer.1} parent=11 // pred_fallthru
        _
      // Predicated region
      $region17: #{edge_gnn_layer.1} parent=11 // pred_check
        %p272 = pneg %p123
      $region18: #{edge_gnn_layer.1} parent=11 // pred_check_branch
        %274 = sbr.rel (%p272) target = $region20
      $region19: #{edge_gnn_layer.1} parent=11 // pred_region
        _
      $region20: #{edge_gnn_layer.1} parent=11 // pred_fallthru
        _
      // Predicated region
      $region21: #{edge_gnn_layer.1} parent=11 // pred_check
        %p275 = pneg %p144
      $region22: #{edge_gnn_layer.1} parent=11 // pred_check_branch
        %277 = sbr.rel (%p275) target = $region24
      $region23: #{edge_gnn_layer.1} parent=11 // pred_region
        _
      $region24: #{edge_gnn_layer.1} parent=11 // pred_fallthru
        _
      // Predicated region
      $region25: #{edge_gnn_layer.1} parent=11 // pred_check
        %p278 = pneg %p165
      $region26: #{edge_gnn_layer.1} parent=11 // pred_check_branch
        %280 = sbr.rel (%p278) target = $region28
      $region27: #{edge_gnn_layer.1} parent=11 // pred_region
        _
      $region28: #{edge_gnn_layer.1} parent=11 // pred_fallthru
        _
      // Predicated region
      $region29: #{edge_gnn_layer.1} parent=11 // pred_check
        %p281 = pneg %p186
      $region30: #{edge_gnn_layer.1} parent=11 // pred_check_branch
        %283 = sbr.rel (%p281) target = $region32
      $region31: #{edge_gnn_layer.1} parent=11 // pred_region
        _
      $region32: #{edge_gnn_layer.1} parent=11 // pred_fallthru
        _
      // Predicated region
      $region33: #{edge_gnn_layer.1} parent=11 // pred_check
        %p284 = pneg %p207
      $region34: #{edge_gnn_layer.1} parent=11 // pred_check_branch
        %286 = sbr.rel (%p284) target = $region36
      $region35: #{edge_gnn_layer.1} parent=11 // pred_region
        _
      $region36: #{edge_gnn_layer.1} parent=11 // pred_fallthru
        _
      // Predicated region
      $region37: #{edge_gnn_layer.1} parent=11 // pred_check
        %p287 = pneg %p228
      $region38: #{edge_gnn_layer.1} parent=11 // pred_check_branch
        %289 = sbr.rel (%p287) target = $region40
      $region39: #{edge_gnn_layer.1} parent=11 // pred_region
        _
      $region40: #{edge_gnn_layer.1} parent=11 // pred_fallthru
        _
    $region12: #{edge_gnn_layer.1} parent=5 // pred_fallthru
      _
    %p290 = scmp.lt.s32.totalorder %s15, 2
    // Predicated region
    $region41: #{edge_gnn_layer.1} parent=5 // pred_check
      %p291 = pneg %p290
    $region42: #{edge_gnn_layer.1} parent=5 // pred_check_branch
      %293 = sbr.rel (%p291) target = $region44
    $region43: #{edge_gnn_layer.1} parent=5 // pred_region
      // Predicated region
      $region45: #{edge_gnn_layer.1} parent=43 // pred_check
        %p294 = pneg %p70
      $region46: #{edge_gnn_layer.1} parent=43 // pred_check_branch
        %296 = sbr.rel (%p294) target = $region48
      $region47: #{edge_gnn_layer.1} parent=43 // pred_region
        %s297 = smul.u32 4, %s22
        %s298 = smul.u32 2, %s23
        %p299 = scmp.lt.s32.totalorder %s297, 7
        %s300 = scalar_select %p299, %s297, 7
        %p301 = scmp.lt.s32.totalorder %s298, 1
        %s302 = scalar_select %p301, %s298, 1
        %s303 = smul.addr %s300, 2
        %s304 = sadd.s32 %s302, %s303
        %s305 = smul.addr %s304, 8
        %s306 = scalar_lea.vmem %s1, %s305
        %s307 = smul.u32 4, %s22
        %s308 = smul.u32 2, %s23
      $region48: #{edge_gnn_layer.1} parent=43 // pred_fallthru
        _
      // Predicated region
      $region49: #{edge_gnn_layer.1} parent=43 // pred_check
        %p309 = pneg %p96
      $region50: #{edge_gnn_layer.1} parent=43 // pred_check_branch
        %311 = sbr.rel (%p309) target = $region52
      $region51: #{edge_gnn_layer.1} parent=43 // pred_region
        %s312 = smul.u32 16, %s22
        %p313 = scmp.lt.s32.totalorder %s312, 31
        %s314 = scalar_select %p313, %s312, 31
        %s315 = smul.addr %s314, 8
        %s316 = scalar_lea.vmem %s2, %s315
        %s317 = smul.u32 16, %s22
      $region52: #{edge_gnn_layer.1} parent=43 // pred_fallthru
        _
    $region44: #{edge_gnn_layer.1} parent=5 // pred_fallthru
      _
    %p318 = scmp.le.s32.totalorder 1, %s15
    %p319 = scmp.lt.s32.totalorder %s15, 3
    %p320 = pnand %p318, %p319
    %p321 = pneg %p320
    // Predicated region
    $region53: #{edge_gnn_layer.1} parent=5 // pred_check
      _
    $region54: #{edge_gnn_layer.1} parent=5 // pred_check_branch
      %323 = sbr.rel (%p320) target = $region56
    $region55: #{edge_gnn_layer.1} parent=5 // pred_region
      %s324 = ssub.s32 %s15, 1
      %p325 = pneg %p48
      %p326 = pneg %p45
      %s327 = smul.u32 4, %s24
      %s328 = smul.u32 2, %s25
      %p329 = scmp.lt.s32.totalorder %s327, 7
      %s330 = scalar_select %p329, %s327, 7
      %p331 = scmp.lt.s32.totalorder %s328, 1
      %s332 = scalar_select %p331, %s328, 1
      %s333 = smul.addr %s330, 2
      %s334 = sadd.s32 %s332, %s333
      %s335 = smul.addr %s334, 8
      %s336 = scalar_lea.vmem %s1, %s335
      %p337 = pneg %p76
      %p338 = pneg %p73
      %s339 = smul.u32 16, %s24
      %p340 = scmp.lt.s32.totalorder %s339, 31
      %s341 = scalar_select %p340, %s339, 31
      %s342 = smul.addr %s341, 8
      %s343 = scalar_lea.vmem %s2, %s342
      %p344 = pneg %p102
      %p345 = pneg %p99
      %p346 = pneg %p123
      %p347 = pneg %p120
      %p348 = pneg %p144
      %p349 = pneg %p141
      %p350 = pneg %p165
      %p351 = pneg %p162
      %p352 = pneg %p186
      %p353 = pneg %p183
      %p354 = pneg %p207
      %p355 = pneg %p204
      %p356 = pneg %p228
      %p357 = pneg %p225
      %p358 = pneg %p254
      %p359 = pneg %p251
      %s360 = smul.u32 16, %s24
      %p361 = scmp.lt.s32.totalorder %s360, 31
      %s362 = scalar_select %p361, %s360, 31
      %s363 = smul.addr %s362, 8
      %s364 = scalar_lea.vmem %s9, %s363
      %s365 = smul.u32 4, %s24
      %s366 = smul.u32 2, %s25
      %p367 = scmp.lt.s32.totalorder %s365, 7
      %s368 = scalar_select %p367, %s365, 7
      %p369 = scmp.lt.s32.totalorder %s366, 1
      %s370 = scalar_select %p369, %s366, 1
      %s371 = smul.addr %s368, 2
      %s372 = sadd.s32 %s370, %s371
      %s373 = smul.addr %s372, 8
      %s374 = scalar_lea.vmem %s1, %s373
      %s375 = smul.u32 4, %s24
      %s376 = smul.u32 2, %s25
      %s377 = smul.u32 16, %s24
      %p378 = scmp.lt.s32.totalorder %s377, 31
      %s379 = scalar_select %p378, %s377, 31
      %s380 = smul.addr %s379, 8
      %s381 = scalar_lea.vmem %s2, %s380
      %s382 = smul.u32 16, %s24
      %s383 = smul.u32 16, %s24
      %p384 = scmp.lt.s32.totalorder %s383, 31
      %s385 = scalar_select %p384, %s383, 31
      %s386 = smul.addr %s385, 8
      %s387 = scalar_lea.vmem %s9, %s386
      %s388 = smul.u32 16, %s24
      %s390 = smul.u32 %s25, 256
      %s391 = sshra.s32 %s390, 3
      %s392 = sand.u32 %s390, 7
      %s393 = smul.addr %s391, 4
      %s394 = scalar_lea.vmem %s0, %s393
      %v395 = vld [vmem:[%s394] sm:$0xf]
      %v396 = vld [vmem:[%s394 + $0x4] sm:$0xf]
      %v397 = vld [vmem:[%s394 + $0x8] sm:$0xf]
      %v398 = vld [vmem:[%s394 + $0xc] sm:$0xf]
      %v399 = vld [vmem:[%s394 + $0x10] sm:$0xf]
      %v400 = vld [vmem:[%s394 + $0x14] sm:$0xf]
      %v401 = vld [vmem:[%s394 + $0x18] sm:$0xf]
      %v402 = vld [vmem:[%s394 + $0x1c] sm:$0xf]
      %v403 = vld [vmem:[%s394 + $0x20] sm:$0xf]
      %v404 = vld [vmem:[%s394 + $0x24] sm:$0xf]
      %v405 = vld [vmem:[%s394 + $0x28] sm:$0xf]
      %v406 = vld [vmem:[%s394 + $0x2c] sm:$0xf]
      %v407 = vld [vmem:[%s394 + $0x30] sm:$0xf]
      %v408 = vld [vmem:[%s394 + $0x34] sm:$0xf]
      %v409 = vld [vmem:[%s394 + $0x38] sm:$0xf]
      %v410 = vld [vmem:[%s394 + $0x3c] sm:$0xf]
      %v411 = vld [vmem:[%s394 + $0x40] sm:$0xf]
      %v412 = vld [vmem:[%s394 + $0x44] sm:$0xf]
      %v413 = vld [vmem:[%s394 + $0x48] sm:$0xf]
      %v414 = vld [vmem:[%s394 + $0x4c] sm:$0xf]
      %v415 = vld [vmem:[%s394 + $0x50] sm:$0xf]
      %v416 = vld [vmem:[%s394 + $0x54] sm:$0xf]
      %v417 = vld [vmem:[%s394 + $0x58] sm:$0xf]
      %v418 = vld [vmem:[%s394 + $0x5c] sm:$0xf]
      %v419 = vld [vmem:[%s394 + $0x60] sm:$0xf]
      %v420 = vld [vmem:[%s394 + $0x64] sm:$0xf]
      %v421 = vld [vmem:[%s394 + $0x68] sm:$0xf]
      %v422 = vld [vmem:[%s394 + $0x6c] sm:$0xf]
      %v423 = vld [vmem:[%s394 + $0x70] sm:$0xf]
      %v424 = vld [vmem:[%s394 + $0x74] sm:$0xf]
      %v425 = vld [vmem:[%s394 + $0x78] sm:$0xf]
      %v426 = vld [vmem:[%s394 + $0x7c] sm:$0xf]
      %v427 = vld [vmem:[%s374] sm:$0xff]
      %v428 = vld [vmem:[%s374 + $0x8] sm:$0xff]
      %v429 = vld [vmem:[%s374 + $0x10] sm:$0xff]
      %v430 = vld [vmem:[%s374 + $0x18] sm:$0xff]
      %v431 = vld [vmem:[%s374 + $0x20] sm:$0xff]
      %v432 = vld [vmem:[%s374 + $0x28] sm:$0xff]
      %v433 = vld [vmem:[%s374 + $0x30] sm:$0xff]
      %v434 = vld [vmem:[%s374 + $0x38] sm:$0xff]
      %v435 = vunpack.c.l.s8.bf16 %v427
      %v436 = vunpack.c.l.s8.bf16 %v428
      %v437 = vunpack.c.h.s8.bf16 %v427
      %v438 = vunpack.c.h.s8.bf16 %v428
      %v439 = vunpack.c.l.s8.bf16 %v429
      %v440 = vunpack.c.l.s8.bf16 %v430
      %v441 = vunpack.c.h.s8.bf16 %v429
      %v442 = vunpack.c.h.s8.bf16 %v430
      %v443 = vunpack.c.l.s8.bf16 %v431
      %v444 = vunpack.c.l.s8.bf16 %v432
      %v445 = vunpack.c.h.s8.bf16 %v431
      %v446 = vunpack.c.h.s8.bf16 %v432
      %v447 = vunpack.c.l.s8.bf16 %v433
      %v448 = vunpack.c.l.s8.bf16 %v434
      %v449 = vunpack.c.h.s8.bf16 %v433
      %v450 = vunpack.c.h.s8.bf16 %v434
      %v483 = vunpack.c.l.b16 %v395
      %v484 = vunpack.c.l.b16 %v396
      %v485 = vunpack.c.l.b16 %v397
      %v486 = vunpack.c.l.b16 %v398
      %v487 = vunpack.c.l.b16 %v399
      %v488 = vunpack.c.l.b16 %v400
      %v489 = vunpack.c.l.b16 %v401
      %v490 = vunpack.c.l.b16 %v402
      %v491 = vunpack.c.l.b16 %v403
      %v492 = vunpack.c.l.b16 %v404
      %v493 = vunpack.c.l.b16 %v405
      %v494 = vunpack.c.l.b16 %v406
      %v495 = vunpack.c.l.b16 %v407
      %v496 = vunpack.c.l.b16 %v408
      %v497 = vunpack.c.l.b16 %v409
      %v498 = vunpack.c.l.b16 %v410
      %v499 = vunpack.c.l.b16 %v411
      %v500 = vunpack.c.l.b16 %v412
      %v501 = vunpack.c.l.b16 %v413
      %v502 = vunpack.c.l.b16 %v414
      %v503 = vunpack.c.l.b16 %v415
      %v504 = vunpack.c.l.b16 %v416
      %v505 = vunpack.c.l.b16 %v417
      %v506 = vunpack.c.l.b16 %v418
      %v507 = vunpack.c.l.b16 %v419
      %v508 = vunpack.c.l.b16 %v420
      %v509 = vunpack.c.l.b16 %v421
      %v510 = vunpack.c.l.b16 %v422
      %v511 = vunpack.c.l.b16 %v423
      %v512 = vunpack.c.l.b16 %v424
      %v513 = vunpack.c.l.b16 %v425
      %v514 = vunpack.c.l.b16 %v426
      %v515 = vpack.c.b16 %v484, %v483
      %v516 = vpack.c.b16 %v486, %v485
      %v517 = vpack.c.b16 %v488, %v487
      %v518 = vpack.c.b16 %v490, %v489
      %v519 = vpack.c.b16 %v492, %v491
      %v520 = vpack.c.b16 %v494, %v493
      %v521 = vpack.c.b16 %v496, %v495
      %v522 = vpack.c.b16 %v498, %v497
      %v523 = vpack.c.b16 %v500, %v499
      %v524 = vpack.c.b16 %v502, %v501
      %v525 = vpack.c.b16 %v504, %v503
      %v526 = vpack.c.b16 %v506, %v505
      %v527 = vpack.c.b16 %v508, %v507
      %v528 = vpack.c.b16 %v510, %v509
      %v529 = vpack.c.b16 %v512, %v511
      %v530 = vpack.c.b16 %v514, %v513
      %547 = vmatprep.subr.bf16.mxu0 0
      %548 = vmatpush1.bf16.msra.mxu0 %v522
      %549 = vmatprep.subr.bf16.mxu0 0
      %550 = vmatpush1.bf16.msra.mxu0 %v521
      %551 = vmatprep.subr.bf16.mxu0 0
      %552 = vmatpush1.bf16.msra.mxu0 %v520
      %553 = vmatprep.subr.bf16.mxu0 0
      %554 = vmatpush1.bf16.msra.mxu0 %v519
      %555 = vmatprep.subr.bf16.mxu0 0
      %556 = vmatpush1.bf16.msra.mxu0 %v518
      %557 = vmatprep.subr.bf16.mxu0 0
      %558 = vmatpush1.bf16.msra.mxu0 %v517
      %559 = vmatprep.subr.bf16.mxu0 0
      %560 = vmatpush1.bf16.msra.mxu0 %v516
      %561 = vmatprep.subr.bf16.mxu0 0
      %562 = vmatpush1.bf16.msra.mxu0 %v515
      %563 = vmatprep.subr.bf16.mxu0 0
      %564 = vmatpush2.bf16.msra.mxu0 %v530
      %565 = vmatprep.subr.bf16.mxu0 0
      %566 = vmatpush2.bf16.msra.mxu0 %v529
      %567 = vmatprep.subr.bf16.mxu0 0
      %568 = vmatpush2.bf16.msra.mxu0 %v528
      %569 = vmatprep.subr.bf16.mxu0 0
      %570 = vmatpush2.bf16.msra.mxu0 %v527
      %571 = vmatprep.subr.bf16.mxu0 0
      %572 = vmatpush2.bf16.msra.mxu0 %v526
      %573 = vmatprep.subr.bf16.mxu0 0
      %574 = vmatpush2.bf16.msra.mxu0 %v525
      %575 = vmatprep.subr.bf16.mxu0 0
      %576 = vmatpush2.bf16.msra.mxu0 %v524
      %577 = vmatprep.subr.bf16.mxu0 0
      %578 = vmatpush2.bf16.msra.mxu0 %v523
      %579 = vmatprep.mubr.bf16.mxu0 %v436
      %580 = vmatmul.mubr.bf16.gmra.mxu0 %v435
      %v581 = vpop.f32.mrf.mxu0
      %v582 = vadd.f32 0.0, %v581
      %v583 = vpop.f32.mrf.mxu0
      %v584 = vpop.f32.mrf.mxu0
      %v585 = vadd.f32 0.0, %v584
      %v586 = vpop.f32.mrf.mxu0
      %587 = vmatprep.mubr.bf16.mxu0 %v438
      %588 = vmatmul.mubr.bf16.gmra.mxu0 %v437
      %v589 = vpop.f32.mrf.mxu0
      %v590 = vadd.f32 0.0, %v589
      %v591 = vpop.f32.mrf.mxu0
      %v592 = vpop.f32.mrf.mxu0
      %v593 = vadd.f32 0.0, %v592
      %v594 = vpop.f32.mrf.mxu0
      %595 = vmatprep.mubr.bf16.mxu0 %v440
      %596 = vmatmul.mubr.bf16.gmra.mxu0 %v439
      %v597 = vpop.f32.mrf.mxu0
      %v598 = vadd.f32 0.0, %v597
      %v599 = vpop.f32.mrf.mxu0
      %v600 = vpop.f32.mrf.mxu0
      %v601 = vadd.f32 0.0, %v600
      %v602 = vpop.f32.mrf.mxu0
      %603 = vmatprep.mubr.bf16.mxu0 %v442
      %604 = vmatmul.mubr.bf16.gmra.mxu0 %v441
      %v605 = vpop.f32.mrf.mxu0
      %v606 = vadd.f32 0.0, %v605
      %v607 = vpop.f32.mrf.mxu0
      %v608 = vpop.f32.mrf.mxu0
      %v609 = vadd.f32 0.0, %v608
      %v610 = vpop.f32.mrf.mxu0
      %611 = vmatprep.mubr.bf16.mxu0 %v444
      %612 = vmatmul.mubr.bf16.gmra.mxu0 %v443
      %v613 = vpop.f32.mrf.mxu0
      %v614 = vadd.f32 0.0, %v613
      %v615 = vpop.f32.mrf.mxu0
      %v616 = vpop.f32.mrf.mxu0
      %v617 = vadd.f32 0.0, %v616
      %v618 = vpop.f32.mrf.mxu0
      %619 = vmatprep.mubr.bf16.mxu0 %v446
      %620 = vmatmul.mubr.bf16.gmra.mxu0 %v445
      %v621 = vpop.f32.mrf.mxu0
      %v622 = vadd.f32 0.0, %v621
      %v623 = vpop.f32.mrf.mxu0
      %v624 = vpop.f32.mrf.mxu0
      %v625 = vadd.f32 0.0, %v624
      %v626 = vpop.f32.mrf.mxu0
      %627 = vmatprep.mubr.bf16.mxu0 %v448
      %628 = vmatmul.mubr.bf16.gmra.mxu0 %v447
      %v629 = vpop.f32.mrf.mxu0
      %v630 = vadd.f32 0.0, %v629
      %v631 = vpop.f32.mrf.mxu0
      %v632 = vpop.f32.mrf.mxu0
      %v633 = vadd.f32 0.0, %v632
      %v634 = vpop.f32.mrf.mxu0
      %635 = vmatprep.mubr.bf16.mxu0 %v450
      %636 = vmatmul.mubr.bf16.gmra.mxu0 %v449
      %v637 = vpop.f32.mrf.mxu0
      %v638 = vadd.f32 0.0, %v637
      %v639 = vpop.f32.mrf.mxu0
      %v640 = vpop.f32.mrf.mxu0
      %v641 = vadd.f32 0.0, %v640
      %v642 = vpop.f32.mrf.mxu0
      %643 = vdwg.mxu0
      %p644 = scmp.eq.s32.totalorder %s25, 0
      // Predicated region
      $region57: #{edge_gnn_layer.1} parent=55 // pred_check
        %p645 = pneg %p644
      $region58: #{edge_gnn_layer.1} parent=55 // pred_check_branch
        %647 = sbr.rel (%p645) target = $region60
      $region59: #{edge_gnn_layer.1} parent=55 // pred_region
        %vm648 = vcmask 261120
        %649 = vst.msk [vmem:[#allocation2] sm:$0xff] %vm648, %v582
        %650 = vst.msk [vmem:[#allocation2 + $0x8] sm:$0xff] %vm648, %v585
        %651 = vst.msk [vmem:[#allocation2 + $0x10] sm:$0xff] %vm648, %v590
        %652 = vst.msk [vmem:[#allocation2 + $0x18] sm:$0xff] %vm648, %v593
        %653 = vst.msk [vmem:[#allocation2 + $0x20] sm:$0xff] %vm648, %v598
        %654 = vst.msk [vmem:[#allocation2 + $0x28] sm:$0xff] %vm648, %v601
        %655 = vst.msk [vmem:[#allocation2 + $0x30] sm:$0xff] %vm648, %v606
        %656 = vst.msk [vmem:[#allocation2 + $0x38] sm:$0xff] %vm648, %v609
        %657 = vst.msk [vmem:[#allocation2 + $0x40] sm:$0xff] %vm648, %v614
        %658 = vst.msk [vmem:[#allocation2 + $0x48] sm:$0xff] %vm648, %v617
        %659 = vst.msk [vmem:[#allocation2 + $0x50] sm:$0xff] %vm648, %v622
        %660 = vst.msk [vmem:[#allocation2 + $0x58] sm:$0xff] %vm648, %v625
        %661 = vst.msk [vmem:[#allocation2 + $0x60] sm:$0xff] %vm648, %v630
        %662 = vst.msk [vmem:[#allocation2 + $0x68] sm:$0xff] %vm648, %v633
        %663 = vst.msk [vmem:[#allocation2 + $0x70] sm:$0xff] %vm648, %v638
        %664 = vst.msk [vmem:[#allocation2 + $0x78] sm:$0xff] %vm648, %v641
      $region60: #{edge_gnn_layer.1} parent=55 // pred_fallthru
        _
      %p665 = scmp.gt.s32.totalorder %s25, 0
      // Predicated region
      $region61: #{edge_gnn_layer.1} parent=55 // pred_check
        %p666 = pneg %p665
      $region62: #{edge_gnn_layer.1} parent=55 // pred_check_branch
        %668 = sbr.rel (%p666) target = $region64
      $region63: #{edge_gnn_layer.1} parent=55 // pred_region
        %v669 = vld [vmem:[#allocation2] sm:$0xff]
        %v670 = vld [vmem:[#allocation2 + $0x8] sm:$0xff]
        %v671 = vld [vmem:[#allocation2 + $0x10] sm:$0xff]
        %v672 = vld [vmem:[#allocation2 + $0x18] sm:$0xff]
        %v673 = vld [vmem:[#allocation2 + $0x20] sm:$0xff]
        %v674 = vld [vmem:[#allocation2 + $0x28] sm:$0xff]
        %v675 = vld [vmem:[#allocation2 + $0x30] sm:$0xff]
        %v676 = vld [vmem:[#allocation2 + $0x38] sm:$0xff]
        %v677 = vld [vmem:[#allocation2 + $0x40] sm:$0xff]
        %v678 = vld [vmem:[#allocation2 + $0x48] sm:$0xff]
        %v679 = vld [vmem:[#allocation2 + $0x50] sm:$0xff]
        %v680 = vld [vmem:[#allocation2 + $0x58] sm:$0xff]
        %v681 = vld [vmem:[#allocation2 + $0x60] sm:$0xff]
        %v682 = vld [vmem:[#allocation2 + $0x68] sm:$0xff]
        %v683 = vld [vmem:[#allocation2 + $0x70] sm:$0xff]
        %v684 = vld [vmem:[#allocation2 + $0x78] sm:$0xff]
        %v685 = vadd.f32 %v669, %v582
        %v686 = vadd.f32 %v670, %v585
        %v687 = vadd.f32 %v671, %v590
        %v688 = vadd.f32 %v672, %v593
        %v689 = vadd.f32 %v673, %v598
        %v690 = vadd.f32 %v674, %v601
        %v691 = vadd.f32 %v675, %v606
        %v692 = vadd.f32 %v676, %v609
        %v693 = vadd.f32 %v677, %v614
        %v694 = vadd.f32 %v678, %v617
        %v695 = vadd.f32 %v679, %v622
        %v696 = vadd.f32 %v680, %v625
        %v697 = vadd.f32 %v681, %v630
        %v698 = vadd.f32 %v682, %v633
        %v699 = vadd.f32 %v683, %v638
        %v700 = vadd.f32 %v684, %v641
        %vm701 = vcmask 261120
        %702 = vst.msk [vmem:[#allocation2] sm:$0xff] %vm701, %v685
        %703 = vst.msk [vmem:[#allocation2 + $0x8] sm:$0xff] %vm701, %v686
        %704 = vst.msk [vmem:[#allocation2 + $0x10] sm:$0xff] %vm701, %v687
        %705 = vst.msk [vmem:[#allocation2 + $0x18] sm:$0xff] %vm701, %v688
        %706 = vst.msk [vmem:[#allocation2 + $0x20] sm:$0xff] %vm701, %v689
        %707 = vst.msk [vmem:[#allocation2 + $0x28] sm:$0xff] %vm701, %v690
        %708 = vst.msk [vmem:[#allocation2 + $0x30] sm:$0xff] %vm701, %v691
        %709 = vst.msk [vmem:[#allocation2 + $0x38] sm:$0xff] %vm701, %v692
        %710 = vst.msk [vmem:[#allocation2 + $0x40] sm:$0xff] %vm701, %v693
        %711 = vst.msk [vmem:[#allocation2 + $0x48] sm:$0xff] %vm701, %v694
        %712 = vst.msk [vmem:[#allocation2 + $0x50] sm:$0xff] %vm701, %v695
        %713 = vst.msk [vmem:[#allocation2 + $0x58] sm:$0xff] %vm701, %v696
        %714 = vst.msk [vmem:[#allocation2 + $0x60] sm:$0xff] %vm701, %v697
        %715 = vst.msk [vmem:[#allocation2 + $0x68] sm:$0xff] %vm701, %v698
        %716 = vst.msk [vmem:[#allocation2 + $0x70] sm:$0xff] %vm701, %v699
        %717 = vst.msk [vmem:[#allocation2 + $0x78] sm:$0xff] %vm701, %v700
      $region64: #{edge_gnn_layer.1} parent=55 // pred_fallthru
        _
      // Predicated region
      $region65: #{edge_gnn_layer.1} parent=55 // pred_check
        %p718 = pneg %p644
      $region66: #{edge_gnn_layer.1} parent=55 // pred_check_branch
        %720 = sbr.rel (%p718) target = $region68
      $region67: #{edge_gnn_layer.1} parent=55 // pred_region
        %v721 = vld [vmem:[%s381] sm:$0xff]
        %v722 = vld [vmem:[%s381 + $0x8] sm:$0xff]
        %v723 = vld [vmem:[%s381 + $0x10] sm:$0xff]
        %v724 = vld [vmem:[%s381 + $0x18] sm:$0xff]
        %v725 = vld [vmem:[%s381 + $0x20] sm:$0xff]
        %v726 = vld [vmem:[%s381 + $0x28] sm:$0xff]
        %v727 = vld [vmem:[%s381 + $0x30] sm:$0xff]
        %v728 = vld [vmem:[%s381 + $0x38] sm:$0xff]
        %v729 = vld [vmem:[%s381 + $0x40] sm:$0xff]
        %v730 = vld [vmem:[%s381 + $0x48] sm:$0xff]
        %v731 = vld [vmem:[%s381 + $0x50] sm:$0xff]
        %v732 = vld [vmem:[%s381 + $0x58] sm:$0xff]
        %v733 = vld [vmem:[%s381 + $0x60] sm:$0xff]
        %v734 = vld [vmem:[%s381 + $0x68] sm:$0xff]
        %v735 = vld [vmem:[%s381 + $0x70] sm:$0xff]
        %v736 = vld [vmem:[%s381 + $0x78] sm:$0xff]
        %v737 = vld [vmem:[#allocation2] sm:$0xff]
        %v738 = vld [vmem:[#allocation2 + $0x8] sm:$0xff]
        %v739 = vld [vmem:[#allocation2 + $0x10] sm:$0xff]
        %v740 = vld [vmem:[#allocation2 + $0x18] sm:$0xff]
        %v741 = vld [vmem:[#allocation2 + $0x20] sm:$0xff]
        %v742 = vld [vmem:[#allocation2 + $0x28] sm:$0xff]
        %v743 = vld [vmem:[#allocation2 + $0x30] sm:$0xff]
        %v744 = vld [vmem:[#allocation2 + $0x38] sm:$0xff]
        %v745 = vld [vmem:[#allocation2 + $0x40] sm:$0xff]
        %v746 = vld [vmem:[#allocation2 + $0x48] sm:$0xff]
        %v747 = vld [vmem:[#allocation2 + $0x50] sm:$0xff]
        %v748 = vld [vmem:[#allocation2 + $0x58] sm:$0xff]
        %v749 = vld [vmem:[#allocation2 + $0x60] sm:$0xff]
        %v750 = vld [vmem:[#allocation2 + $0x68] sm:$0xff]
        %v751 = vld [vmem:[#allocation2 + $0x70] sm:$0xff]
        %v752 = vld [vmem:[#allocation2 + $0x78] sm:$0xff]
        %v753 = vld [vmem:[%s3] sm:$0xff]
        %v754 = vld [vmem:[%s3 + $0x8] sm:$0xff]
        %v755 = vld [vmem:[%s3 + $0x10] sm:$0xff]
        %v756 = vld [vmem:[%s3 + $0x18] sm:$0xff]
        %v757 = vld [vmem:[%s4] sm:$0x1]
        %v759 = vlaneseq
        %v760 = vshrl.u32 %v759, 7
        %v761 = vsub.s32 0, %v760
        %v762 = vrot.slane %v757, %v761
        %vm764 = vcmask 261120
        %v766 = vsel %vm764, %v737, 0
        %v769 = vsel %vm764, %v738, 0
        %v772 = vsel %vm764, %v739, 0
        %v775 = vsel %vm764, %v740, 0
        %v778 = vsel %vm764, %v741, 0
        %v781 = vsel %vm764, %v742, 0
        %v784 = vsel %vm764, %v743, 0
        %v787 = vsel %vm764, %v744, 0
        %v790 = vsel %vm764, %v745, 0
        %v793 = vsel %vm764, %v746, 0
        %v796 = vsel %vm764, %v747, 0
        %v799 = vsel %vm764, %v748, 0
        %v802 = vsel %vm764, %v749, 0
        %v805 = vsel %vm764, %v750, 0
        %v808 = vsel %vm764, %v751, 0
        %v811 = vsel %vm764, %v752, 0
        %813 = vmatprep.subr.mxu0 0.0
        %814 = vmatpush1.msra.mxu0 0.0
        %815 = vmatprep.subr.mxu0 0.0
        %816 = vmatpush1.msra.mxu0 0.0
        %817 = vmatprep.subr.mxu0 0.0
        %818 = vmatpush1.msra.mxu0 0.0
        %819 = vmatprep.subr.mxu0 0.0
        %820 = vmatpush1.msra.mxu0 0.0
        %821 = vmatprep.subr.mxu0 0.0
        %822 = vmatpush1.msra.mxu0 0.0
        %823 = vmatprep.subr.mxu0 0.0
        %824 = vmatpush1.msra.mxu0 0.0
        %825 = vmatprep.subr.mxu0 0.0
        %826 = vmatpush1.msra.mxu0 0.0
        %827 = vmatprep.subr.mxu0 0.0
        %828 = vmatpush1.msra.mxu0 0.0
        %829 = vmatprep.subr.mxu0 0.0
        %830 = vmatpush1.msra.mxu0 0.0
        %831 = vmatprep.subr.mxu0 0.0
        %832 = vmatpush1.msra.mxu0 0.0
        %833 = vmatprep.subr.mxu0 0.0
        %834 = vmatpush1.msra.mxu0 0.0
        %835 = vmatprep.subr.mxu0 0.0
        %836 = vmatpush1.msra.mxu0 0.0
        %837 = vmatprep.subr.mxu0 0.0
        %838 = vmatpush1.msra.mxu0 %v756
        %839 = vmatprep.subr.mxu0 0.0
        %840 = vmatpush1.msra.mxu0 %v755
        %841 = vmatprep.subr.mxu0 0.0
        %842 = vmatpush1.msra.mxu0 %v754
        %843 = vmatprep.subr.mxu0 0.0
        %844 = vmatpush1.msra.mxu0 %v753
        %845 = vmatprep.subr.mxu0 0.0
        %846 = vmatpush2.msra.mxu0 0.0
        %847 = vmatprep.subr.mxu0 0.0
        %848 = vmatpush2.msra.mxu0 0.0
        %849 = vmatprep.subr.mxu0 0.0
        %850 = vmatpush2.msra.mxu0 0.0
        %851 = vmatprep.subr.mxu0 0.0
        %852 = vmatpush2.msra.mxu0 0.0
        %853 = vmatprep.subr.mxu0 0.0
        %854 = vmatpush2.msra.mxu0 0.0
        %855 = vmatprep.subr.mxu0 0.0
        %856 = vmatpush2.msra.mxu0 0.0
        %857 = vmatprep.subr.mxu0 0.0
        %858 = vmatpush2.msra.mxu0 0.0
        %859 = vmatprep.subr.mxu0 0.0
        %860 = vmatpush2.msra.mxu0 0.0
        %861 = vmatprep.subr.mxu0 0.0
        %862 = vmatpush2.msra.mxu0 0.0
        %863 = vmatprep.subr.mxu0 0.0
        %864 = vmatpush2.msra.mxu0 0.0
        %865 = vmatprep.subr.mxu0 0.0
        %866 = vmatpush2.msra.mxu0 0.0
        %867 = vmatprep.subr.mxu0 0.0
        %868 = vmatpush2.msra.mxu0 0.0
        %869 = vmatprep.subr.mxu0 0.0
        %870 = vmatpush2.msra.mxu0 0.0
        %871 = vmatprep.subr.mxu0 0.0
        %872 = vmatpush2.msra.mxu0 0.0
        %873 = vmatprep.subr.mxu0 0.0
        %874 = vmatpush2.msra.mxu0 0.0
        %875 = vmatprep.subr.mxu0 0.0
        %876 = vmatpush2.msra.mxu0 0.0
        %877 = vmatprep.mubr.f32.mxu0 0.0
        %878 = vmatmul.mubr.f32.gmra.mxu0 %v766
        %v879 = vpop.f32.mrf.mxu0
        %v880 = vadd.f32 %v762, %v879
        %v881 = vpop.f32.mrf.mxu0
        %882 = vmatprep.mubr.f32.mxu0 0.0
        %883 = vmatmul.mubr.f32.gmra.mxu0 %v769
        %v884 = vpop.f32.mrf.mxu0
        %v885 = vadd.f32 %v762, %v884
        %v886 = vpop.f32.mrf.mxu0
        %887 = vmatprep.mubr.f32.mxu0 0.0
        %888 = vmatmul.mubr.f32.gmra.mxu0 %v772
        %v889 = vpop.f32.mrf.mxu0
        %v890 = vadd.f32 %v762, %v889
        %v891 = vpop.f32.mrf.mxu0
        %892 = vmatprep.mubr.f32.mxu0 0.0
        %893 = vmatmul.mubr.f32.gmra.mxu0 %v775
        %v894 = vpop.f32.mrf.mxu0
        %v895 = vadd.f32 %v762, %v894
        %v896 = vpop.f32.mrf.mxu0
        %897 = vmatprep.mubr.f32.mxu0 0.0
        %898 = vmatmul.mubr.f32.gmra.mxu0 %v778
        %v899 = vpop.f32.mrf.mxu0
        %v900 = vadd.f32 %v762, %v899
        %v901 = vpop.f32.mrf.mxu0
        %902 = vmatprep.mubr.f32.mxu0 0.0
        %903 = vmatmul.mubr.f32.gmra.mxu0 %v781
        %v904 = vpop.f32.mrf.mxu0
        %v905 = vadd.f32 %v762, %v904
        %v906 = vpop.f32.mrf.mxu0
        %907 = vmatprep.mubr.f32.mxu0 0.0
        %908 = vmatmul.mubr.f32.gmra.mxu0 %v784
        %v909 = vpop.f32.mrf.mxu0
        %v910 = vadd.f32 %v762, %v909
        %v911 = vpop.f32.mrf.mxu0
        %912 = vmatprep.mubr.f32.mxu0 0.0
        %913 = vmatmul.mubr.f32.gmra.mxu0 %v787
        %v914 = vpop.f32.mrf.mxu0
        %v915 = vadd.f32 %v762, %v914
        %v916 = vpop.f32.mrf.mxu0
        %917 = vmatprep.mubr.f32.mxu0 0.0
        %918 = vmatmul.mubr.f32.gmra.mxu0 %v790
        %v919 = vpop.f32.mrf.mxu0
        %v920 = vadd.f32 %v762, %v919
        %v921 = vpop.f32.mrf.mxu0
        %922 = vmatprep.mubr.f32.mxu0 0.0
        %923 = vmatmul.mubr.f32.gmra.mxu0 %v793
        %v924 = vpop.f32.mrf.mxu0
        %v925 = vadd.f32 %v762, %v924
        %v926 = vpop.f32.mrf.mxu0
        %927 = vmatprep.mubr.f32.mxu0 0.0
        %928 = vmatmul.mubr.f32.gmra.mxu0 %v796
        %v929 = vpop.f32.mrf.mxu0
        %v930 = vadd.f32 %v762, %v929
        %v931 = vpop.f32.mrf.mxu0
        %932 = vmatprep.mubr.f32.mxu0 0.0
        %933 = vmatmul.mubr.f32.gmra.mxu0 %v799
        %v934 = vpop.f32.mrf.mxu0
        %v935 = vadd.f32 %v762, %v934
        %v936 = vpop.f32.mrf.mxu0
        %937 = vmatprep.mubr.f32.mxu0 0.0
        %938 = vmatmul.mubr.f32.gmra.mxu0 %v802
        %v939 = vpop.f32.mrf.mxu0
        %v940 = vadd.f32 %v762, %v939
        %v941 = vpop.f32.mrf.mxu0
        %942 = vmatprep.mubr.f32.mxu0 0.0
        %943 = vmatmul.mubr.f32.gmra.mxu0 %v805
        %v944 = vpop.f32.mrf.mxu0
        %v945 = vadd.f32 %v762, %v944
        %v946 = vpop.f32.mrf.mxu0
        %947 = vmatprep.mubr.f32.mxu0 0.0
        %948 = vmatmul.mubr.f32.gmra.mxu0 %v808
        %v949 = vpop.f32.mrf.mxu0
        %v950 = vadd.f32 %v762, %v949
        %v951 = vpop.f32.mrf.mxu0
        %952 = vmatprep.mubr.f32.mxu0 0.0
        %953 = vmatmul.mubr.f32.gmra.mxu0 %v811
        %v954 = vpop.f32.mrf.mxu0
        %v955 = vadd.f32 %v762, %v954
        %v956 = vpop.f32.mrf.mxu0
        %957 = vdwg.mxu0
        %v958 = vmax.f32 %v880, 0.0
        %v959 = vmax.f32 %v885, 0.0
        %v960 = vmax.f32 %v890, 0.0
        %v961 = vmax.f32 %v895, 0.0
        %v962 = vmax.f32 %v900, 0.0
        %v963 = vmax.f32 %v905, 0.0
        %v964 = vmax.f32 %v910, 0.0
        %v965 = vmax.f32 %v915, 0.0
        %v966 = vmax.f32 %v920, 0.0
        %v967 = vmax.f32 %v925, 0.0
        %v968 = vmax.f32 %v930, 0.0
        %v969 = vmax.f32 %v935, 0.0
        %v970 = vmax.f32 %v940, 0.0
        %v971 = vmax.f32 %v945, 0.0
        %v972 = vmax.f32 %v950, 0.0
        %v973 = vmax.f32 %v955, 0.0
        %v974 = vld [vmem:[%s5] sm:$0xff]
        %v975 = vld [vmem:[%s5 + $0x8] sm:$0xff]
        %v976 = vld [vmem:[%s5 + $0x10] sm:$0xff]
        %v977 = vld [vmem:[%s5 + $0x18] sm:$0xff]
        %v978 = vld [vmem:[%s6] sm:$0x1]
        %v980 = vlaneseq
        %v981 = vshrl.u32 %v980, 7
        %v982 = vsub.s32 0, %v981
        %v983 = vrot.slane %v978, %v982
        %v986 = vsel %vm764, %v958, 0
        %v989 = vsel %vm764, %v959, 0
        %v992 = vsel %vm764, %v960, 0
        %v995 = vsel %vm764, %v961, 0
        %v998 = vsel %vm764, %v962, 0
        %v1001 = vsel %vm764, %v963, 0
        %v1004 = vsel %vm764, %v964, 0
        %v1007 = vsel %vm764, %v965, 0
        %v1010 = vsel %vm764, %v966, 0
        %v1013 = vsel %vm764, %v967, 0
        %v1016 = vsel %vm764, %v968, 0
        %v1019 = vsel %vm764, %v969, 0
        %v1022 = vsel %vm764, %v970, 0
        %v1025 = vsel %vm764, %v971, 0
        %v1028 = vsel %vm764, %v972, 0
        %v1031 = vsel %vm764, %v973, 0
        %1033 = vmatprep.subr.mxu0 0.0
        %1034 = vmatpush1.msra.mxu0 0.0
        %1035 = vmatprep.subr.mxu0 0.0
        %1036 = vmatpush1.msra.mxu0 0.0
        %1037 = vmatprep.subr.mxu0 0.0
        %1038 = vmatpush1.msra.mxu0 0.0
        %1039 = vmatprep.subr.mxu0 0.0
        %1040 = vmatpush1.msra.mxu0 0.0
        %1041 = vmatprep.subr.mxu0 0.0
        %1042 = vmatpush1.msra.mxu0 0.0
        %1043 = vmatprep.subr.mxu0 0.0
        %1044 = vmatpush1.msra.mxu0 0.0
        %1045 = vmatprep.subr.mxu0 0.0
        %1046 = vmatpush1.msra.mxu0 0.0
        %1047 = vmatprep.subr.mxu0 0.0
        %1048 = vmatpush1.msra.mxu0 0.0
        %1049 = vmatprep.subr.mxu0 0.0
        %1050 = vmatpush1.msra.mxu0 0.0
        %1051 = vmatprep.subr.mxu0 0.0
        %1052 = vmatpush1.msra.mxu0 0.0
        %1053 = vmatprep.subr.mxu0 0.0
        %1054 = vmatpush1.msra.mxu0 0.0
        %1055 = vmatprep.subr.mxu0 0.0
        %1056 = vmatpush1.msra.mxu0 0.0
        %1057 = vmatprep.subr.mxu0 0.0
        %1058 = vmatpush1.msra.mxu0 %v977
        %1059 = vmatprep.subr.mxu0 0.0
        %1060 = vmatpush1.msra.mxu0 %v976
        %1061 = vmatprep.subr.mxu0 0.0
        %1062 = vmatpush1.msra.mxu0 %v975
        %1063 = vmatprep.subr.mxu0 0.0
        %1064 = vmatpush1.msra.mxu0 %v974
        %1065 = vmatprep.subr.mxu0 0.0
        %1066 = vmatpush2.msra.mxu0 0.0
        %1067 = vmatprep.subr.mxu0 0.0
        %1068 = vmatpush2.msra.mxu0 0.0
        %1069 = vmatprep.subr.mxu0 0.0
        %1070 = vmatpush2.msra.mxu0 0.0
        %1071 = vmatprep.subr.mxu0 0.0
        %1072 = vmatpush2.msra.mxu0 0.0
        %1073 = vmatprep.subr.mxu0 0.0
        %1074 = vmatpush2.msra.mxu0 0.0
        %1075 = vmatprep.subr.mxu0 0.0
        %1076 = vmatpush2.msra.mxu0 0.0
        %1077 = vmatprep.subr.mxu0 0.0
        %1078 = vmatpush2.msra.mxu0 0.0
        %1079 = vmatprep.subr.mxu0 0.0
        %1080 = vmatpush2.msra.mxu0 0.0
        %1081 = vmatprep.subr.mxu0 0.0
        %1082 = vmatpush2.msra.mxu0 0.0
        %1083 = vmatprep.subr.mxu0 0.0
        %1084 = vmatpush2.msra.mxu0 0.0
        %1085 = vmatprep.subr.mxu0 0.0
        %1086 = vmatpush2.msra.mxu0 0.0
        %1087 = vmatprep.subr.mxu0 0.0
        %1088 = vmatpush2.msra.mxu0 0.0
        %1089 = vmatprep.subr.mxu0 0.0
        %1090 = vmatpush2.msra.mxu0 0.0
        %1091 = vmatprep.subr.mxu0 0.0
        %1092 = vmatpush2.msra.mxu0 0.0
        %1093 = vmatprep.subr.mxu0 0.0
        %1094 = vmatpush2.msra.mxu0 0.0
        %1095 = vmatprep.subr.mxu0 0.0
        %1096 = vmatpush2.msra.mxu0 0.0
        %1097 = vmatprep.mubr.f32.mxu0 0.0
        %1098 = vmatmul.mubr.f32.gmra.mxu0 %v986
        %v1099 = vpop.f32.mrf.mxu0
        %v1100 = vadd.f32 %v983, %v1099
        %v1101 = vpop.f32.mrf.mxu0
        %1102 = vmatprep.mubr.f32.mxu0 0.0
        %1103 = vmatmul.mubr.f32.gmra.mxu0 %v989
        %v1104 = vpop.f32.mrf.mxu0
        %v1105 = vadd.f32 %v983, %v1104
        %v1106 = vpop.f32.mrf.mxu0
        %1107 = vmatprep.mubr.f32.mxu0 0.0
        %1108 = vmatmul.mubr.f32.gmra.mxu0 %v992
        %v1109 = vpop.f32.mrf.mxu0
        %v1110 = vadd.f32 %v983, %v1109
        %v1111 = vpop.f32.mrf.mxu0
        %1112 = vmatprep.mubr.f32.mxu0 0.0
        %1113 = vmatmul.mubr.f32.gmra.mxu0 %v995
        %v1114 = vpop.f32.mrf.mxu0
        %v1115 = vadd.f32 %v983, %v1114
        %v1116 = vpop.f32.mrf.mxu0
        %1117 = vmatprep.mubr.f32.mxu0 0.0
        %1118 = vmatmul.mubr.f32.gmra.mxu0 %v998
        %v1119 = vpop.f32.mrf.mxu0
        %v1120 = vadd.f32 %v983, %v1119
        %v1121 = vpop.f32.mrf.mxu0
        %1122 = vmatprep.mubr.f32.mxu0 0.0
        %1123 = vmatmul.mubr.f32.gmra.mxu0 %v1001
        %v1124 = vpop.f32.mrf.mxu0
        %v1125 = vadd.f32 %v983, %v1124
        %v1126 = vpop.f32.mrf.mxu0
        %1127 = vmatprep.mubr.f32.mxu0 0.0
        %1128 = vmatmul.mubr.f32.gmra.mxu0 %v1004
        %v1129 = vpop.f32.mrf.mxu0
        %v1130 = vadd.f32 %v983, %v1129
        %v1131 = vpop.f32.mrf.mxu0
        %1132 = vmatprep.mubr.f32.mxu0 0.0
        %1133 = vmatmul.mubr.f32.gmra.mxu0 %v1007
        %v1134 = vpop.f32.mrf.mxu0
        %v1135 = vadd.f32 %v983, %v1134
        %v1136 = vpop.f32.mrf.mxu0
        %1137 = vmatprep.mubr.f32.mxu0 0.0
        %1138 = vmatmul.mubr.f32.gmra.mxu0 %v1010
        %v1139 = vpop.f32.mrf.mxu0
        %v1140 = vadd.f32 %v983, %v1139
        %v1141 = vpop.f32.mrf.mxu0
        %1142 = vmatprep.mubr.f32.mxu0 0.0
        %1143 = vmatmul.mubr.f32.gmra.mxu0 %v1013
        %v1144 = vpop.f32.mrf.mxu0
        %v1145 = vadd.f32 %v983, %v1144
        %v1146 = vpop.f32.mrf.mxu0
        %1147 = vmatprep.mubr.f32.mxu0 0.0
        %1148 = vmatmul.mubr.f32.gmra.mxu0 %v1016
        %v1149 = vpop.f32.mrf.mxu0
        %v1150 = vadd.f32 %v983, %v1149
        %v1151 = vpop.f32.mrf.mxu0
        %1152 = vmatprep.mubr.f32.mxu0 0.0
        %1153 = vmatmul.mubr.f32.gmra.mxu0 %v1019
        %v1154 = vpop.f32.mrf.mxu0
        %v1155 = vadd.f32 %v983, %v1154
        %v1156 = vpop.f32.mrf.mxu0
        %1157 = vmatprep.mubr.f32.mxu0 0.0
        %1158 = vmatmul.mubr.f32.gmra.mxu0 %v1022
        %v1159 = vpop.f32.mrf.mxu0
        %v1160 = vadd.f32 %v983, %v1159
        %v1161 = vpop.f32.mrf.mxu0
        %1162 = vmatprep.mubr.f32.mxu0 0.0
        %1163 = vmatmul.mubr.f32.gmra.mxu0 %v1025
        %v1164 = vpop.f32.mrf.mxu0
        %v1165 = vadd.f32 %v983, %v1164
        %v1166 = vpop.f32.mrf.mxu0
        %1167 = vmatprep.mubr.f32.mxu0 0.0
        %1168 = vmatmul.mubr.f32.gmra.mxu0 %v1028
        %v1169 = vpop.f32.mrf.mxu0
        %v1170 = vadd.f32 %v983, %v1169
        %v1171 = vpop.f32.mrf.mxu0
        %1172 = vmatprep.mubr.f32.mxu0 0.0
        %1173 = vmatmul.mubr.f32.gmra.mxu0 %v1031
        %v1174 = vpop.f32.mrf.mxu0
        %v1175 = vadd.f32 %v983, %v1174
        %v1176 = vpop.f32.mrf.mxu0
        %1177 = vdwg.mxu0
        %v1178 = vld [vmem:[%s7] sm:$0xff]
        %v1179 = vld [vmem:[%s7 + $0x8] sm:$0xff]
        %v1180 = vld [vmem:[%s7 + $0x10] sm:$0xff]
        %v1181 = vld [vmem:[%s7 + $0x18] sm:$0xff]
        %v1182 = vld [vmem:[%s8] sm:$0x1]
        %v1184 = vlaneseq
        %v1185 = vshrl.u32 %v1184, 7
        %v1186 = vsub.s32 0, %v1185
        %v1187 = vrot.slane %v1182, %v1186
        %v1190 = vsel %vm764, %v721, 0
        %v1193 = vsel %vm764, %v722, 0
        %v1196 = vsel %vm764, %v723, 0
        %v1199 = vsel %vm764, %v724, 0
        %v1202 = vsel %vm764, %v725, 0
        %v1205 = vsel %vm764, %v726, 0
        %v1208 = vsel %vm764, %v727, 0
        %v1211 = vsel %vm764, %v728, 0
        %v1214 = vsel %vm764, %v729, 0
        %v1217 = vsel %vm764, %v730, 0
        %v1220 = vsel %vm764, %v731, 0
        %v1223 = vsel %vm764, %v732, 0
        %v1226 = vsel %vm764, %v733, 0
        %v1229 = vsel %vm764, %v734, 0
        %v1232 = vsel %vm764, %v735, 0
        %v1235 = vsel %vm764, %v736, 0
        %1237 = vmatprep.subr.mxu0 0.0
        %1238 = vmatpush1.msra.mxu0 0.0
        %1239 = vmatprep.subr.mxu0 0.0
        %1240 = vmatpush1.msra.mxu0 0.0
        %1241 = vmatprep.subr.mxu0 0.0
        %1242 = vmatpush1.msra.mxu0 0.0
        %1243 = vmatprep.subr.mxu0 0.0
        %1244 = vmatpush1.msra.mxu0 0.0
        %1245 = vmatprep.subr.mxu0 0.0
        %1246 = vmatpush1.msra.mxu0 0.0
        %1247 = vmatprep.subr.mxu0 0.0
        %1248 = vmatpush1.msra.mxu0 0.0
        %1249 = vmatprep.subr.mxu0 0.0
        %1250 = vmatpush1.msra.mxu0 0.0
        %1251 = vmatprep.subr.mxu0 0.0
        %1252 = vmatpush1.msra.mxu0 0.0
        %1253 = vmatprep.subr.mxu0 0.0
        %1254 = vmatpush1.msra.mxu0 0.0
        %1255 = vmatprep.subr.mxu0 0.0
        %1256 = vmatpush1.msra.mxu0 0.0
        %1257 = vmatprep.subr.mxu0 0.0
        %1258 = vmatpush1.msra.mxu0 0.0
        %1259 = vmatprep.subr.mxu0 0.0
        %1260 = vmatpush1.msra.mxu0 0.0
        %1261 = vmatprep.subr.mxu0 0.0
        %1262 = vmatpush1.msra.mxu0 %v1181
        %1263 = vmatprep.subr.mxu0 0.0
        %1264 = vmatpush1.msra.mxu0 %v1180
        %1265 = vmatprep.subr.mxu0 0.0
        %1266 = vmatpush1.msra.mxu0 %v1179
        %1267 = vmatprep.subr.mxu0 0.0
        %1268 = vmatpush1.msra.mxu0 %v1178
        %1269 = vmatprep.subr.mxu0 0.0
        %1270 = vmatpush2.msra.mxu0 0.0
        %1271 = vmatprep.subr.mxu0 0.0
        %1272 = vmatpush2.msra.mxu0 0.0
        %1273 = vmatprep.subr.mxu0 0.0
        %1274 = vmatpush2.msra.mxu0 0.0
        %1275 = vmatprep.subr.mxu0 0.0
        %1276 = vmatpush2.msra.mxu0 0.0
        %1277 = vmatprep.subr.mxu0 0.0
        %1278 = vmatpush2.msra.mxu0 0.0
        %1279 = vmatprep.subr.mxu0 0.0
        %1280 = vmatpush2.msra.mxu0 0.0
        %1281 = vmatprep.subr.mxu0 0.0
        %1282 = vmatpush2.msra.mxu0 0.0
        %1283 = vmatprep.subr.mxu0 0.0
        %1284 = vmatpush2.msra.mxu0 0.0
        %1285 = vmatprep.subr.mxu0 0.0
        %1286 = vmatpush2.msra.mxu0 0.0
        %1287 = vmatprep.subr.mxu0 0.0
        %1288 = vmatpush2.msra.mxu0 0.0
        %1289 = vmatprep.subr.mxu0 0.0
        %1290 = vmatpush2.msra.mxu0 0.0
        %1291 = vmatprep.subr.mxu0 0.0
        %1292 = vmatpush2.msra.mxu0 0.0
        %1293 = vmatprep.subr.mxu0 0.0
        %1294 = vmatpush2.msra.mxu0 0.0
        %1295 = vmatprep.subr.mxu0 0.0
        %1296 = vmatpush2.msra.mxu0 0.0
        %1297 = vmatprep.subr.mxu0 0.0
        %1298 = vmatpush2.msra.mxu0 0.0
        %1299 = vmatprep.subr.mxu0 0.0
        %1300 = vmatpush2.msra.mxu0 0.0
        %1301 = vmatprep.mubr.f32.mxu0 0.0
        %1302 = vmatmul.mubr.f32.gmra.mxu0 %v1190
        %v1303 = vpop.f32.mrf.mxu0
        %v1304 = vadd.f32 %v1187, %v1303
        %v1305 = vpop.f32.mrf.mxu0
        %1306 = vmatprep.mubr.f32.mxu0 0.0
        %1307 = vmatmul.mubr.f32.gmra.mxu0 %v1193
        %v1308 = vpop.f32.mrf.mxu0
        %v1309 = vadd.f32 %v1187, %v1308
        %v1310 = vpop.f32.mrf.mxu0
        %1311 = vmatprep.mubr.f32.mxu0 0.0
        %1312 = vmatmul.mubr.f32.gmra.mxu0 %v1196
        %v1313 = vpop.f32.mrf.mxu0
        %v1314 = vadd.f32 %v1187, %v1313
        %v1315 = vpop.f32.mrf.mxu0
        %1316 = vmatprep.mubr.f32.mxu0 0.0
        %1317 = vmatmul.mubr.f32.gmra.mxu0 %v1199
        %v1318 = vpop.f32.mrf.mxu0
        %v1319 = vadd.f32 %v1187, %v1318
        %v1320 = vpop.f32.mrf.mxu0
        %1321 = vmatprep.mubr.f32.mxu0 0.0
        %1322 = vmatmul.mubr.f32.gmra.mxu0 %v1202
        %v1323 = vpop.f32.mrf.mxu0
        %v1324 = vadd.f32 %v1187, %v1323
        %v1325 = vpop.f32.mrf.mxu0
        %1326 = vmatprep.mubr.f32.mxu0 0.0
        %1327 = vmatmul.mubr.f32.gmra.mxu0 %v1205
        %v1328 = vpop.f32.mrf.mxu0
        %v1329 = vadd.f32 %v1187, %v1328
        %v1330 = vpop.f32.mrf.mxu0
        %1331 = vmatprep.mubr.f32.mxu0 0.0
        %1332 = vmatmul.mubr.f32.gmra.mxu0 %v1208
        %v1333 = vpop.f32.mrf.mxu0
        %v1334 = vadd.f32 %v1187, %v1333
        %v1335 = vpop.f32.mrf.mxu0
        %1336 = vmatprep.mubr.f32.mxu0 0.0
        %1337 = vmatmul.mubr.f32.gmra.mxu0 %v1211
        %v1338 = vpop.f32.mrf.mxu0
        %v1339 = vadd.f32 %v1187, %v1338
        %v1340 = vpop.f32.mrf.mxu0
        %1341 = vmatprep.mubr.f32.mxu0 0.0
        %1342 = vmatmul.mubr.f32.gmra.mxu0 %v1214
        %v1343 = vpop.f32.mrf.mxu0
        %v1344 = vadd.f32 %v1187, %v1343
        %v1345 = vpop.f32.mrf.mxu0
        %1346 = vmatprep.mubr.f32.mxu0 0.0
        %1347 = vmatmul.mubr.f32.gmra.mxu0 %v1217
        %v1348 = vpop.f32.mrf.mxu0
        %v1349 = vadd.f32 %v1187, %v1348
        %v1350 = vpop.f32.mrf.mxu0
        %1351 = vmatprep.mubr.f32.mxu0 0.0
        %1352 = vmatmul.mubr.f32.gmra.mxu0 %v1220
        %v1353 = vpop.f32.mrf.mxu0
        %v1354 = vadd.f32 %v1187, %v1353
        %v1355 = vpop.f32.mrf.mxu0
        %1356 = vmatprep.mubr.f32.mxu0 0.0
        %1357 = vmatmul.mubr.f32.gmra.mxu0 %v1223
        %v1358 = vpop.f32.mrf.mxu0
        %v1359 = vadd.f32 %v1187, %v1358
        %v1360 = vpop.f32.mrf.mxu0
        %1361 = vmatprep.mubr.f32.mxu0 0.0
        %1362 = vmatmul.mubr.f32.gmra.mxu0 %v1226
        %v1363 = vpop.f32.mrf.mxu0
        %v1364 = vadd.f32 %v1187, %v1363
        %v1365 = vpop.f32.mrf.mxu0
        %1366 = vmatprep.mubr.f32.mxu0 0.0
        %1367 = vmatmul.mubr.f32.gmra.mxu0 %v1229
        %v1368 = vpop.f32.mrf.mxu0
        %v1369 = vadd.f32 %v1187, %v1368
        %v1370 = vpop.f32.mrf.mxu0
        %1371 = vmatprep.mubr.f32.mxu0 0.0
        %1372 = vmatmul.mubr.f32.gmra.mxu0 %v1232
        %v1373 = vpop.f32.mrf.mxu0
        %v1374 = vadd.f32 %v1187, %v1373
        %v1375 = vpop.f32.mrf.mxu0
        %1376 = vmatprep.mubr.f32.mxu0 0.0
        %1377 = vmatmul.mubr.f32.gmra.mxu0 %v1235
        %v1378 = vpop.f32.mrf.mxu0
        %v1379 = vadd.f32 %v1187, %v1378
        %v1380 = vpop.f32.mrf.mxu0
        %1381 = vdwg.mxu0
        %v1382 = vadd.f32 %v1100, %v1304
        %v1383 = vadd.f32 %v1105, %v1309
        %v1384 = vadd.f32 %v1110, %v1314
        %v1385 = vadd.f32 %v1115, %v1319
        %v1386 = vadd.f32 %v1120, %v1324
        %v1387 = vadd.f32 %v1125, %v1329
        %v1388 = vadd.f32 %v1130, %v1334
        %v1389 = vadd.f32 %v1135, %v1339
        %v1390 = vadd.f32 %v1140, %v1344
        %v1391 = vadd.f32 %v1145, %v1349
        %v1392 = vadd.f32 %v1150, %v1354
        %v1393 = vadd.f32 %v1155, %v1359
        %v1394 = vadd.f32 %v1160, %v1364
        %v1395 = vadd.f32 %v1165, %v1369
        %v1396 = vadd.f32 %v1170, %v1374
        %v1397 = vadd.f32 %v1175, %v1379
        %v1398 = vxor.u32 %v1382, 2147483648
        %v1399 = vxor.u32 %v1383, 2147483648
        %v1400 = vxor.u32 %v1384, 2147483648
        %v1401 = vxor.u32 %v1385, 2147483648
        %v1402 = vxor.u32 %v1386, 2147483648
        %v1403 = vxor.u32 %v1387, 2147483648
        %v1404 = vxor.u32 %v1388, 2147483648
        %v1405 = vxor.u32 %v1389, 2147483648
        %v1406 = vxor.u32 %v1390, 2147483648
        %v1407 = vxor.u32 %v1391, 2147483648
        %v1408 = vxor.u32 %v1392, 2147483648
        %v1409 = vxor.u32 %v1393, 2147483648
        %v1410 = vxor.u32 %v1394, 2147483648
        %v1411 = vxor.u32 %v1395, 2147483648
        %v1412 = vxor.u32 %v1396, 2147483648
        %v1413 = vxor.u32 %v1397, 2147483648
        %v1414 = vmul.f32 %v1398, 1.442695
        %v1415 = vpow.pop %v1414
        %v1416 = vmul.f32 %v1399, 1.442695
        %v1417 = vpow.pop %v1416
        %v1418 = vmul.f32 %v1400, 1.442695
        %v1419 = vpow.pop %v1418
        %v1420 = vmul.f32 %v1401, 1.442695
        %v1421 = vpow.pop %v1420
        %v1422 = vmul.f32 %v1402, 1.442695
        %v1423 = vpow.pop %v1422
        %v1424 = vmul.f32 %v1403, 1.442695
        %v1425 = vpow.pop %v1424
        %v1426 = vmul.f32 %v1404, 1.442695
        %v1427 = vpow.pop %v1426
        %v1428 = vmul.f32 %v1405, 1.442695
        %v1429 = vpow.pop %v1428
        %v1430 = vmul.f32 %v1406, 1.442695
        %v1431 = vpow.pop %v1430
        %v1432 = vmul.f32 %v1407, 1.442695
        %v1433 = vpow.pop %v1432
        %v1434 = vmul.f32 %v1408, 1.442695
        %v1435 = vpow.pop %v1434
        %v1436 = vmul.f32 %v1409, 1.442695
        %v1437 = vpow.pop %v1436
        %v1438 = vmul.f32 %v1410, 1.442695
        %v1439 = vpow.pop %v1438
        %v1440 = vmul.f32 %v1411, 1.442695
        %v1441 = vpow.pop %v1440
        %v1442 = vmul.f32 %v1412, 1.442695
        %v1443 = vpow.pop %v1442
        %v1444 = vmul.f32 %v1413, 1.442695
        %v1445 = vpow.pop %v1444
        %v1446 = vadd.f32 %v1415, 1.0
        %v1447 = vadd.f32 %v1417, 1.0
        %v1448 = vadd.f32 %v1419, 1.0
        %v1449 = vadd.f32 %v1421, 1.0
        %v1450 = vadd.f32 %v1423, 1.0
        %v1451 = vadd.f32 %v1425, 1.0
        %v1452 = vadd.f32 %v1427, 1.0
        %v1453 = vadd.f32 %v1429, 1.0
        %v1454 = vadd.f32 %v1431, 1.0
        %v1455 = vadd.f32 %v1433, 1.0
        %v1456 = vadd.f32 %v1435, 1.0
        %v1457 = vadd.f32 %v1437, 1.0
        %v1458 = vadd.f32 %v1439, 1.0
        %v1459 = vadd.f32 %v1441, 1.0
        %v1460 = vadd.f32 %v1443, 1.0
        %v1461 = vadd.f32 %v1445, 1.0
        %v1462 = vrcp.pop %v1446
        %v1463 = vmul.f32 1.0, %v1462
        %v1464 = vrcp.pop %v1447
        %v1465 = vmul.f32 1.0, %v1464
        %v1466 = vrcp.pop %v1448
        %v1467 = vmul.f32 1.0, %v1466
        %v1468 = vrcp.pop %v1449
        %v1469 = vmul.f32 1.0, %v1468
        %v1470 = vrcp.pop %v1450
        %v1471 = vmul.f32 1.0, %v1470
        %v1472 = vrcp.pop %v1451
        %v1473 = vmul.f32 1.0, %v1472
        %v1474 = vrcp.pop %v1452
        %v1475 = vmul.f32 1.0, %v1474
        %v1476 = vrcp.pop %v1453
        %v1477 = vmul.f32 1.0, %v1476
        %v1478 = vrcp.pop %v1454
        %v1479 = vmul.f32 1.0, %v1478
        %v1480 = vrcp.pop %v1455
        %v1481 = vmul.f32 1.0, %v1480
        %v1482 = vrcp.pop %v1456
        %v1483 = vmul.f32 1.0, %v1482
        %v1484 = vrcp.pop %v1457
        %v1485 = vmul.f32 1.0, %v1484
        %v1486 = vrcp.pop %v1458
        %v1487 = vmul.f32 1.0, %v1486
        %v1488 = vrcp.pop %v1459
        %v1489 = vmul.f32 1.0, %v1488
        %v1490 = vrcp.pop %v1460
        %v1491 = vmul.f32 1.0, %v1490
        %v1492 = vrcp.pop %v1461
        %v1493 = vmul.f32 1.0, %v1492
        %1510 = vrot.lane.b32.xlu0 %v1304, 64
        %v1511 = vpop.permute.xlu0 %1510
        %1512 = vrot.lane.b32.xlu0 %v1309, 64
        %v1513 = vpop.permute.xlu0 %1512
        %1514 = vrot.lane.b32.xlu0 %v1314, 64
        %v1515 = vpop.permute.xlu0 %1514
        %1516 = vrot.lane.b32.xlu0 %v1319, 64
        %v1517 = vpop.permute.xlu0 %1516
        %1518 = vrot.lane.b32.xlu0 %v1324, 64
        %v1519 = vpop.permute.xlu0 %1518
        %1520 = vrot.lane.b32.xlu0 %v1329, 64
        %v1521 = vpop.permute.xlu0 %1520
        %1522 = vrot.lane.b32.xlu0 %v1334, 64
        %v1523 = vpop.permute.xlu0 %1522
        %1524 = vrot.lane.b32.xlu0 %v1339, 64
        %v1525 = vpop.permute.xlu0 %1524
        %1526 = vrot.lane.b32.xlu0 %v1344, 64
        %v1527 = vpop.permute.xlu0 %1526
        %1528 = vrot.lane.b32.xlu0 %v1349, 64
        %v1529 = vpop.permute.xlu0 %1528
        %1530 = vrot.lane.b32.xlu0 %v1354, 64
        %v1531 = vpop.permute.xlu0 %1530
        %1532 = vrot.lane.b32.xlu0 %v1359, 64
        %v1533 = vpop.permute.xlu0 %1532
        %1534 = vrot.lane.b32.xlu0 %v1364, 64
        %v1535 = vpop.permute.xlu0 %1534
        %1536 = vrot.lane.b32.xlu0 %v1369, 64
        %v1537 = vpop.permute.xlu0 %1536
        %1538 = vrot.lane.b32.xlu0 %v1374, 64
        %v1539 = vpop.permute.xlu0 %1538
        %1540 = vrot.lane.b32.xlu0 %v1379, 64
        %v1541 = vpop.permute.xlu0 %1540
        %v1558 = vmul.f32 %v1463, %v1511
        %v1559 = vmul.f32 %v1465, %v1513
        %v1560 = vmul.f32 %v1467, %v1515
        %v1561 = vmul.f32 %v1469, %v1517
        %v1562 = vmul.f32 %v1471, %v1519
        %v1563 = vmul.f32 %v1473, %v1521
        %v1564 = vmul.f32 %v1475, %v1523
        %v1565 = vmul.f32 %v1477, %v1525
        %v1566 = vmul.f32 %v1479, %v1527
        %v1567 = vmul.f32 %v1481, %v1529
        %v1568 = vmul.f32 %v1483, %v1531
        %v1569 = vmul.f32 %v1485, %v1533
        %v1570 = vmul.f32 %v1487, %v1535
        %v1571 = vmul.f32 %v1489, %v1537
        %v1572 = vmul.f32 %v1491, %v1539
        %v1573 = vmul.f32 %v1493, %v1541
        %1590 = vrot.lane.b32.xlu0 %v1558, 64
        %v1591 = vpop.permute.xlu0 %1590
        %1592 = vrot.lane.b32.xlu0 %v1559, 64
        %v1593 = vpop.permute.xlu0 %1592
        %1594 = vrot.lane.b32.xlu0 %v1560, 64
        %v1595 = vpop.permute.xlu0 %1594
        %1596 = vrot.lane.b32.xlu0 %v1561, 64
        %v1597 = vpop.permute.xlu0 %1596
        %1598 = vrot.lane.b32.xlu0 %v1562, 64
        %v1599 = vpop.permute.xlu0 %1598
        %1600 = vrot.lane.b32.xlu0 %v1563, 64
        %v1601 = vpop.permute.xlu0 %1600
        %1602 = vrot.lane.b32.xlu0 %v1564, 64
        %v1603 = vpop.permute.xlu0 %1602
        %1604 = vrot.lane.b32.xlu0 %v1565, 64
        %v1605 = vpop.permute.xlu0 %1604
        %1606 = vrot.lane.b32.xlu0 %v1566, 64
        %v1607 = vpop.permute.xlu0 %1606
        %1608 = vrot.lane.b32.xlu0 %v1567, 64
        %v1609 = vpop.permute.xlu0 %1608
        %1610 = vrot.lane.b32.xlu0 %v1568, 64
        %v1611 = vpop.permute.xlu0 %1610
        %1612 = vrot.lane.b32.xlu0 %v1569, 64
        %v1613 = vpop.permute.xlu0 %1612
        %1614 = vrot.lane.b32.xlu0 %v1570, 64
        %v1615 = vpop.permute.xlu0 %1614
        %1616 = vrot.lane.b32.xlu0 %v1571, 64
        %v1617 = vpop.permute.xlu0 %1616
        %1618 = vrot.lane.b32.xlu0 %v1572, 64
        %v1619 = vpop.permute.xlu0 %1618
        %1620 = vrot.lane.b32.xlu0 %v1573, 64
        %v1621 = vpop.permute.xlu0 %1620
        %v1638 = vadd.f32 %v1100, %v1591
        %v1639 = vadd.f32 %v1105, %v1593
        %v1640 = vadd.f32 %v1110, %v1595
        %v1641 = vadd.f32 %v1115, %v1597
        %v1642 = vadd.f32 %v1120, %v1599
        %v1643 = vadd.f32 %v1125, %v1601
        %v1644 = vadd.f32 %v1130, %v1603
        %v1645 = vadd.f32 %v1135, %v1605
        %v1646 = vadd.f32 %v1140, %v1607
        %v1647 = vadd.f32 %v1145, %v1609
        %v1648 = vadd.f32 %v1150, %v1611
        %v1649 = vadd.f32 %v1155, %v1613
        %v1650 = vadd.f32 %v1160, %v1615
        %v1651 = vadd.f32 %v1165, %v1617
        %v1652 = vadd.f32 %v1170, %v1619
        %v1653 = vadd.f32 %v1175, %v1621
        %v1654 = vtanh.pop %v1638
        %v1655 = vtanh.pop %v1639
        %v1656 = vtanh.pop %v1640
        %v1657 = vtanh.pop %v1641
        %v1658 = vtanh.pop %v1642
        %v1659 = vtanh.pop %v1643
        %v1660 = vtanh.pop %v1644
        %v1661 = vtanh.pop %v1645
        %v1662 = vtanh.pop %v1646
        %v1663 = vtanh.pop %v1647
        %v1664 = vtanh.pop %v1648
        %v1665 = vtanh.pop %v1649
        %v1666 = vtanh.pop %v1650
        %v1667 = vtanh.pop %v1651
        %v1668 = vtanh.pop %v1652
        %v1669 = vtanh.pop %v1653
        %v1670 = vsub.f32 1.0, %v1463
        %v1671 = vsub.f32 1.0, %v1465
        %v1672 = vsub.f32 1.0, %v1467
        %v1673 = vsub.f32 1.0, %v1469
        %v1674 = vsub.f32 1.0, %v1471
        %v1675 = vsub.f32 1.0, %v1473
        %v1676 = vsub.f32 1.0, %v1475
        %v1677 = vsub.f32 1.0, %v1477
        %v1678 = vsub.f32 1.0, %v1479
        %v1679 = vsub.f32 1.0, %v1481
        %v1680 = vsub.f32 1.0, %v1483
        %v1681 = vsub.f32 1.0, %v1485
        %v1682 = vsub.f32 1.0, %v1487
        %v1683 = vsub.f32 1.0, %v1489
        %v1684 = vsub.f32 1.0, %v1491
        %v1685 = vsub.f32 1.0, %v1493
        %1702 = vrot.lane.b32.xlu0 %v1654, 96
        %v1703 = vpop.permute.xlu0 %1702
        %1704 = vrot.lane.b32.xlu0 %v1655, 96
        %v1705 = vpop.permute.xlu0 %1704
        %1706 = vrot.lane.b32.xlu0 %v1656, 96
        %v1707 = vpop.permute.xlu0 %1706
        %1708 = vrot.lane.b32.xlu0 %v1657, 96
        %v1709 = vpop.permute.xlu0 %1708
        %1710 = vrot.lane.b32.xlu0 %v1658, 96
        %v1711 = vpop.permute.xlu0 %1710
        %1712 = vrot.lane.b32.xlu0 %v1659, 96
        %v1713 = vpop.permute.xlu0 %1712
        %1714 = vrot.lane.b32.xlu0 %v1660, 96
        %v1715 = vpop.permute.xlu0 %1714
        %1716 = vrot.lane.b32.xlu0 %v1661, 96
        %v1717 = vpop.permute.xlu0 %1716
        %1718 = vrot.lane.b32.xlu0 %v1662, 96
        %v1719 = vpop.permute.xlu0 %1718
        %1720 = vrot.lane.b32.xlu0 %v1663, 96
        %v1721 = vpop.permute.xlu0 %1720
        %1722 = vrot.lane.b32.xlu0 %v1664, 96
        %v1723 = vpop.permute.xlu0 %1722
        %1724 = vrot.lane.b32.xlu0 %v1665, 96
        %v1725 = vpop.permute.xlu0 %1724
        %1726 = vrot.lane.b32.xlu0 %v1666, 96
        %v1727 = vpop.permute.xlu0 %1726
        %1728 = vrot.lane.b32.xlu0 %v1667, 96
        %v1729 = vpop.permute.xlu0 %1728
        %1730 = vrot.lane.b32.xlu0 %v1668, 96
        %v1731 = vpop.permute.xlu0 %1730
        %1732 = vrot.lane.b32.xlu0 %v1669, 96
        %v1733 = vpop.permute.xlu0 %1732
        %v1750 = vmul.f32 %v1670, %v1703
        %v1751 = vmul.f32 %v1671, %v1705
        %v1752 = vmul.f32 %v1672, %v1707
        %v1753 = vmul.f32 %v1673, %v1709
        %v1754 = vmul.f32 %v1674, %v1711
        %v1755 = vmul.f32 %v1675, %v1713
        %v1756 = vmul.f32 %v1676, %v1715
        %v1757 = vmul.f32 %v1677, %v1717
        %v1758 = vmul.f32 %v1678, %v1719
        %v1759 = vmul.f32 %v1679, %v1721
        %v1760 = vmul.f32 %v1680, %v1723
        %v1761 = vmul.f32 %v1681, %v1725
        %v1762 = vmul.f32 %v1682, %v1727
        %v1763 = vmul.f32 %v1683, %v1729
        %v1764 = vmul.f32 %v1684, %v1731
        %v1765 = vmul.f32 %v1685, %v1733
        %1766 = vrot.lane.b32.xlu0 %v721, 32
        %v1767 = vpop.permute.xlu0 %1766
        %1768 = vrot.lane.b32.xlu0 %v722, 32
        %v1769 = vpop.permute.xlu0 %1768
        %1770 = vrot.lane.b32.xlu0 %v723, 32
        %v1771 = vpop.permute.xlu0 %1770
        %1772 = vrot.lane.b32.xlu0 %v724, 32
        %v1773 = vpop.permute.xlu0 %1772
        %1774 = vrot.lane.b32.xlu0 %v725, 32
        %v1775 = vpop.permute.xlu0 %1774
        %1776 = vrot.lane.b32.xlu0 %v726, 32
        %v1777 = vpop.permute.xlu0 %1776
        %1778 = vrot.lane.b32.xlu0 %v727, 32
        %v1779 = vpop.permute.xlu0 %1778
        %1780 = vrot.lane.b32.xlu0 %v728, 32
        %v1781 = vpop.permute.xlu0 %1780
        %1782 = vrot.lane.b32.xlu0 %v729, 32
        %v1783 = vpop.permute.xlu0 %1782
        %1784 = vrot.lane.b32.xlu0 %v730, 32
        %v1785 = vpop.permute.xlu0 %1784
        %1786 = vrot.lane.b32.xlu0 %v731, 32
        %v1787 = vpop.permute.xlu0 %1786
        %1788 = vrot.lane.b32.xlu0 %v732, 32
        %v1789 = vpop.permute.xlu0 %1788
        %1790 = vrot.lane.b32.xlu0 %v733, 32
        %v1791 = vpop.permute.xlu0 %1790
        %1792 = vrot.lane.b32.xlu0 %v734, 32
        %v1793 = vpop.permute.xlu0 %1792
        %1794 = vrot.lane.b32.xlu0 %v735, 32
        %v1795 = vpop.permute.xlu0 %1794
        %1796 = vrot.lane.b32.xlu0 %v736, 32
        %v1797 = vpop.permute.xlu0 %1796
        %v1814 = vmul.f32 %v1463, %v1767
        %v1815 = vmul.f32 %v1465, %v1769
        %v1816 = vmul.f32 %v1467, %v1771
        %v1817 = vmul.f32 %v1469, %v1773
        %v1818 = vmul.f32 %v1471, %v1775
        %v1819 = vmul.f32 %v1473, %v1777
        %v1820 = vmul.f32 %v1475, %v1779
        %v1821 = vmul.f32 %v1477, %v1781
        %v1822 = vmul.f32 %v1479, %v1783
        %v1823 = vmul.f32 %v1481, %v1785
        %v1824 = vmul.f32 %v1483, %v1787
        %v1825 = vmul.f32 %v1485, %v1789
        %v1826 = vmul.f32 %v1487, %v1791
        %v1827 = vmul.f32 %v1489, %v1793
        %v1828 = vmul.f32 %v1491, %v1795
        %v1829 = vmul.f32 %v1493, %v1797
        %v1830 = vadd.f32 %v1750, %v1814
        %v1831 = vadd.f32 %v1751, %v1815
        %v1832 = vadd.f32 %v1752, %v1816
        %v1833 = vadd.f32 %v1753, %v1817
        %v1834 = vadd.f32 %v1754, %v1818
        %v1835 = vadd.f32 %v1755, %v1819
        %v1836 = vadd.f32 %v1756, %v1820
        %v1837 = vadd.f32 %v1757, %v1821
        %v1838 = vadd.f32 %v1758, %v1822
        %v1839 = vadd.f32 %v1759, %v1823
        %v1840 = vadd.f32 %v1760, %v1824
        %v1841 = vadd.f32 %v1761, %v1825
        %v1842 = vadd.f32 %v1762, %v1826
        %v1843 = vadd.f32 %v1763, %v1827
        %v1844 = vadd.f32 %v1764, %v1828
        %v1845 = vadd.f32 %v1765, %v1829
        %1862 = vrot.lane.b32.xlu0 %v1830, 96
        %v1863 = vpop.permute.xlu0 %1862
        %1864 = vrot.lane.b32.xlu0 %v1831, 96
        %v1865 = vpop.permute.xlu0 %1864
        %1866 = vrot.lane.b32.xlu0 %v1832, 96
        %v1867 = vpop.permute.xlu0 %1866
        %1868 = vrot.lane.b32.xlu0 %v1833, 96
        %v1869 = vpop.permute.xlu0 %1868
        %1870 = vrot.lane.b32.xlu0 %v1834, 96
        %v1871 = vpop.permute.xlu0 %1870
        %1872 = vrot.lane.b32.xlu0 %v1835, 96
        %v1873 = vpop.permute.xlu0 %1872
        %1874 = vrot.lane.b32.xlu0 %v1836, 96
        %v1875 = vpop.permute.xlu0 %1874
        %1876 = vrot.lane.b32.xlu0 %v1837, 96
        %v1877 = vpop.permute.xlu0 %1876
        %1878 = vrot.lane.b32.xlu0 %v1838, 96
        %v1879 = vpop.permute.xlu0 %1878
        %1880 = vrot.lane.b32.xlu0 %v1839, 96
        %v1881 = vpop.permute.xlu0 %1880
        %1882 = vrot.lane.b32.xlu0 %v1840, 96
        %v1883 = vpop.permute.xlu0 %1882
        %1884 = vrot.lane.b32.xlu0 %v1841, 96
        %v1885 = vpop.permute.xlu0 %1884
        %1886 = vrot.lane.b32.xlu0 %v1842, 96
        %v1887 = vpop.permute.xlu0 %1886
        %1888 = vrot.lane.b32.xlu0 %v1843, 96
        %v1889 = vpop.permute.xlu0 %1888
        %1890 = vrot.lane.b32.xlu0 %v1844, 96
        %v1891 = vpop.permute.xlu0 %1890
        %1892 = vrot.lane.b32.xlu0 %v1845, 96
        %v1893 = vpop.permute.xlu0 %1892
        %1910 = vst.msk [vmem:[%s387] sm:$0xff] %vm764, %v1863
        %1911 = vst.msk [vmem:[%s387 + $0x8] sm:$0xff] %vm764, %v1865
        %1912 = vst.msk [vmem:[%s387 + $0x10] sm:$0xff] %vm764, %v1867
        %1913 = vst.msk [vmem:[%s387 + $0x18] sm:$0xff] %vm764, %v1869
        %1914 = vst.msk [vmem:[%s387 + $0x20] sm:$0xff] %vm764, %v1871
        %1915 = vst.msk [vmem:[%s387 + $0x28] sm:$0xff] %vm764, %v1873
        %1916 = vst.msk [vmem:[%s387 + $0x30] sm:$0xff] %vm764, %v1875
        %1917 = vst.msk [vmem:[%s387 + $0x38] sm:$0xff] %vm764, %v1877
        %1918 = vst.msk [vmem:[%s387 + $0x40] sm:$0xff] %vm764, %v1879
        %1919 = vst.msk [vmem:[%s387 + $0x48] sm:$0xff] %vm764, %v1881
        %1920 = vst.msk [vmem:[%s387 + $0x50] sm:$0xff] %vm764, %v1883
        %1921 = vst.msk [vmem:[%s387 + $0x58] sm:$0xff] %vm764, %v1885
        %1922 = vst.msk [vmem:[%s387 + $0x60] sm:$0xff] %vm764, %v1887
        %1923 = vst.msk [vmem:[%s387 + $0x68] sm:$0xff] %vm764, %v1889
        %1924 = vst.msk [vmem:[%s387 + $0x70] sm:$0xff] %vm764, %v1891
        %1925 = vst.msk [vmem:[%s387 + $0x78] sm:$0xff] %vm764, %v1893
      $region68: #{edge_gnn_layer.1} parent=55 // pred_fallthru
        _
      %s1926 = smul.u32 16, %s24
      %p1927 = scmp.lt.s32.totalorder %s1926, 31
      %s1928 = scalar_select %p1927, %s1926, 31
      %s1929 = smul.addr %s1928, 8
      %s1930 = scalar_lea.vmem %s9, %s1929
      // Predicated region
      $region69: #{edge_gnn_layer.1} parent=55 // pred_check
        %p1931 = pneg %p251
      $region70: #{edge_gnn_layer.1} parent=55 // pred_check_branch
        %1933 = sbr.rel (%p1931) target = $region72
      $region71: #{edge_gnn_layer.1} parent=55 // pred_region
        %s1934 = smul.u32 16, %s24
      $region72: #{edge_gnn_layer.1} parent=55 // pred_fallthru
        _
    $region56: #{edge_gnn_layer.1} parent=5 // pred_fallthru
      _
    %p1935 = scmp.le.s32.totalorder 2, %s15
    // Predicated region
    $region73: #{edge_gnn_layer.1} parent=5 // pred_check
      %p1936 = pneg %p1935
    $region74: #{edge_gnn_layer.1} parent=5 // pred_check_branch
      %1938 = sbr.rel (%p1936) target = $region76
    $region75: #{edge_gnn_layer.1} parent=5 // pred_region
      %s1939 = ssub.s32 %s15, 2
      // Predicated region
      $region77: #{edge_gnn_layer.1} parent=75 // pred_check
        %p1940 = pneg %p257
      $region78: #{edge_gnn_layer.1} parent=75 // pred_check_branch
        %1942 = sbr.rel (%p1940) target = $region80
      $region79: #{edge_gnn_layer.1} parent=75 // pred_region
        %s1943 = smul.u32 16, %s26
        %p1944 = scmp.lt.s32.totalorder %s1943, 31
        %s1945 = scalar_select %p1944, %s1943, 31
        %s1946 = smul.addr %s1945, 8
        %s1947 = scalar_lea.vmem %s9, %s1946
      $region80: #{edge_gnn_layer.1} parent=75 // pred_fallthru
        _
    $region76: #{edge_gnn_layer.1} parent=5 // pred_fallthru
      _
  $region6: #{edge_gnn_layer.1} parent=0 // loop_footer
    %s19 = sadd.s32 1, %s15
  $region7: #{edge_gnn_layer.1} parent=0 // loop_footer_branch
    %14 = sbr.rel target = $region3
  $region8: #{edge_gnn_layer.1} parent=0 // loop_exit
    _

</llo_original>
